<compile_context>
chip_gen: v6e
topology: v6e:2x2x1
jax: 0.10.0
libtpu: 0.0.40
codegen_flags: <defaults>
</compile_context>

<pallas_src>
import functools

import jax
import jax.numpy as jnp
from jax.experimental import pallas as pl
from jax.experimental.pallas import tpu as pltpu

# Autoencoder dims from the PyTorch module:
#   encoder: 65 -> 48 -> 32 -> 16   (LeakyReLU after each)
#   decoder: 16 -> 32 -> 48 -> 65   (LeakyReLU after each)
DIMS = [65, 48, 32, 16, 32, 48, 65]
NEG_SLOPE = 0.01           # torch.nn.LeakyReLU default
PAD = 128                  # lane-dense padded feature width for hidden layers
DEFAULT_BATCH_TILE = 2048  # amortizes ~0.35us/step grid overhead


def _leaky_relu(x):
    # max(x, a*x) == LeakyReLU(x) for 0 < a < 1: 2 VPU ops (mul+max) instead
    # of 3 (mul+cmp+select), and no live mask vreg.
    return jnp.maximum(x, NEG_SLOPE * x)


def autoencoder_kernel(x_ref,
                       w1, b1, w2, b2, w3, b3,
                       w4, b4, w5, b5, w6, b6,
                       o_ref, *, ew_dtype):
    """Fused 6-layer MLP. Weights bf16 (in,128)-padded, biases f32 (1,128)-padded.

    Matmuls: bf16 x bf16 -> f32 on the MXU. Hidden-layer bias-add + LeakyReLU
    run in `ew_dtype` (bf16 on v6e/v7x, f32 on v5e); the last layer stays f32
    and only the first 65 lanes are stored (masked vst into a 65-wide block).
    """
    def layer(h, w_ref, b_ref, out_dtype):
        y = jnp.dot(h.astype(jnp.bfloat16), w_ref[...],
                    preferred_element_type=jnp.float32) + b_ref[...]
        return _leaky_relu(y.astype(out_dtype))

    h = x_ref[...]                                      # (bt, 65) f32
    for w_ref, b_ref in ((w1, b1), (w2, b2), (w3, b3), (w4, b4), (w5, b5)):
        h = layer(h, w_ref, b_ref, ew_dtype)            # (bt, 128) ew_dtype
    h = layer(h, w6, b6, jnp.float32)                   # (bt, 128) f32
    o_ref[...] = h[:, :o_ref.shape[-1]]                 # store only the 65 real lanes


@functools.partial(jax.jit, static_argnames=("bt", "ew_dtype"))
def _autoencoder_jit(x, flat_params, bt, ew_dtype):
    """x: (B, 65) f32. Pads B to a tile multiple, runs the kernel, slices back.
    Pad and slice live inside this jit so they fuse (no extra eager HBM pass)."""
    B = x.shape[0]
    Bp = pl.cdiv(B, bt) * bt
    if Bp != B:
        x = jnp.pad(x, ((0, Bp - B), (0, 0)))

    # x streams along the batch grid; weights/biases (~0.2 MB total) stay fully
    # resident in VMEM (constant spec -> no per-step DMA / double buffering).
    x_spec = pl.BlockSpec((bt, DIMS[0]), lambda i: (i, 0))
    param_specs = [pl.BlockSpec(memory_space=pltpu.MemorySpace.VMEM)
                   for _ in flat_params]
    out_spec = pl.BlockSpec((bt, DIMS[-1]), lambda i: (i, 0))  # un-padded 65-wide

    out = pl.pallas_call(
        functools.partial(autoencoder_kernel, ew_dtype=ew_dtype),
        out_shape=jax.ShapeDtypeStruct((Bp, DIMS[-1]), jnp.float32),
        grid_spec=pltpu.PrefetchScalarGridSpec(
            num_scalar_prefetch=0,
            grid=(Bp // bt,),
            in_specs=[x_spec] + param_specs,
            out_specs=out_spec,
        ),
        compiler_params=pltpu.CompilerParams(
            dimension_semantics=("parallel",)),   # shards batch grid across TCs
    )(x, *flat_params)
    return out[:B]


def _select_batch_tile(B, batch_tile):
    bt = min(int(batch_tile), pl.next_power_of_2(max(int(B), 8)))
    bt = max(8, (bt // 8) * 8)
    # Guarantee >= 2 grid steps whenever the batch allows it, so both v7x
    # TensorCores get work under dimension_semantics=("parallel",).
    if B >= 16 and pl.cdiv(B, bt) < 2:
        bt = max(8, ((pl.cdiv(B, 2) + 7) // 8) * 8)
    return bt


def _elementwise_dtype():
    """bf16 elementwise on v6e/v7x (bf16 VPU), f32 on v5e and older."""
    try:
        kind = jax.devices()[0].device_kind.lower()
    except Exception:
        return jnp.float32
    if any(g in kind for g in ("v2", "v3", "v4", "v5")):
        return jnp.float32
    return jnp.bfloat16


def autoencoder_forward(x, prepared_params, batch_tile=DEFAULT_BATCH_TILE):
    """x: (B, 65) float32. prepared_params: output of prepare_params(). -> (B, 65) f32."""
    B, D_in = x.shape
    assert D_in == DIMS[0]
    bt = _select_batch_tile(B, batch_tile)
    flat = tuple(t for pair in prepared_params for t in pair)
    return _autoencoder_jit(x, flat, bt, _elementwise_dtype())


def init_params(key):
    """Deterministic init mimicking PyTorch Linear default U(-1/sqrt(fan_in), +).
    Stored as (in, out) f32 weight (transpose of PyTorch (out, in)) and (1, out) bias."""
    params = []
    for i in range(len(DIMS) - 1):
        fan_in, fan_out = DIMS[i], DIMS[i + 1]
        key, kw, kb = jax.random.split(key, 3)
        bound = 1.0 / jnp.sqrt(fan_in)
        w = jax.random.uniform(kw, (fan_in, fan_out), jnp.float32, -bound, bound)
        b = jax.random.uniform(kb, (1, fan_out), jnp.float32, -bound, bound)
        params.append((w, b))
    return params


def prepare_params(params):
    """Zero-pad every layer's output dim to 128 (and input dim to 128 for layers
    after the first, matching padded activations); bf16 weights, f32 biases."""
    prepared = []
    for li, (w, b) in enumerate(params):
        fan_in, fan_out = w.shape
        in_pad = fan_in if li == 0 else PAD
        wp = jnp.zeros((in_pad, PAD), jnp.float32).at[:fan_in, :fan_out].set(w)
        bp = jnp.zeros((1, PAD), jnp.float32).at[:, :fan_out].set(b.reshape(1, -1))
        prepared.append((wp.astype(jnp.bfloat16), bp))
    return prepared


def reference_forward_f32(x, params):
    """Pure-f32 reference (exact PyTorch-forward semantics)."""
    h = x
    for w, b in params:
        h = _leaky_relu(h @ w + b)
    return h


def reference_forward_mirrored(x, prepared_params, ew_dtype):
    """Reference that mirrors the kernel math exactly (bf16 MXU inputs, f32
    accumulate, ew_dtype elementwise on hidden layers, f32 final layer)."""
    h = x
    last = len(prepared_params) - 1
    for li, (w, b) in enumerate(prepared_params):
        y = jnp.dot(h.astype(jnp.bfloat16), w,
                    preferred_element_type=jnp.float32) + b
        dt = jnp.float32 if li == last else ew_dtype
        h = _leaky_relu(y.astype(dt))
    return h[:, :DIMS[-1]]


if __name__ == "__main__":
    key = jax.random.PRNGKey(0)
    key, kx = jax.random.split(key)

    # Small batch, deliberately not a multiple of 8: exercises the pad path,
    # the >=2-grid-step split, and the un-padded 65-wide output store.
    batch = 100
    x = jax.random.normal(kx, (batch, DIMS[0]), jnp.float32)
    params = init_params(key)
    prepared = prepare_params(params)

    out = autoencoder_forward(x, prepared)
    out = jax.block_until_ready(out)
    assert out.shape == (batch, DIMS[-1]), out.shape

    # Exact-path check (same bf16/f32 math as the kernel).
    ew_dtype = _elementwise_dtype()
    ref_exact = reference_forward_mirrored(x, prepared, ew_dtype)
    err_exact = float(jnp.max(jnp.abs(out - ref_exact)))
    assert jnp.allclose(out, ref_exact, atol=2e-3, rtol=2e-3), err_exact

    # Sanity check against the pure-f32 PyTorch-equivalent forward
    # (bf16 MXU inputs / bf16 hidden elementwise are a deliberate tradeoff).
    ref_f32 = reference_forward_f32(x, params)
    err_f32 = float(jnp.max(jnp.abs(out - ref_f32)))
    assert jnp.allclose(out, ref_f32, atol=1e-1, rtol=1e-1), err_f32

    print("KERNEL_OK")
</pallas_src>

<mosaic_0001>
module attributes {stable_mosaic.version = 11 : i64} {
  func.func @autoencoder_kernel(%arg0: i32, %arg1: memref<56x65xf32, #tpu.memory_space<vmem>>, %arg2: memref<65x128xbf16, #tpu.memory_space<vmem>>, %arg3: memref<1x128xf32, #tpu.memory_space<vmem>>, %arg4: memref<128x128xbf16, #tpu.memory_space<vmem>>, %arg5: memref<1x128xf32, #tpu.memory_space<vmem>>, %arg6: memref<128x128xbf16, #tpu.memory_space<vmem>>, %arg7: memref<1x128xf32, #tpu.memory_space<vmem>>, %arg8: memref<128x128xbf16, #tpu.memory_space<vmem>>, %arg9: memref<1x128xf32, #tpu.memory_space<vmem>>, %arg10: memref<128x128xbf16, #tpu.memory_space<vmem>>, %arg11: memref<1x128xf32, #tpu.memory_space<vmem>>, %arg12: memref<128x128xbf16, #tpu.memory_space<vmem>>, %arg13: memref<1x128xf32, #tpu.memory_space<vmem>>, %arg14: memref<56x65xf32, #tpu.memory_space<vmem>>) attributes {dimension_semantics = [#tpu.dimension_semantics<parallel>], iteration_bounds = array<i64: 2>, scalar_prefetch = 0 : i64, scratch_operands = 0 : i64, tpu.core_type = #tpu.core_type<tc>, window_params = [{transform_indices = @transform_0, window_bounds = array<i64: 56, 65>}, {pipeline_mode = #tpu.pipeline_mode<synchronous>, transform_indices = @transform_1, window_bounds = array<i64: 65, 128>}, {pipeline_mode = #tpu.pipeline_mode<synchronous>, transform_indices = @transform_2, window_bounds = array<i64: 1, 128>}, {pipeline_mode = #tpu.pipeline_mode<synchronous>, transform_indices = @transform_3, window_bounds = array<i64: 128, 128>}, {pipeline_mode = #tpu.pipeline_mode<synchronous>, transform_indices = @transform_4, window_bounds = array<i64: 1, 128>}, {pipeline_mode = #tpu.pipeline_mode<synchronous>, transform_indices = @transform_5, window_bounds = array<i64: 128, 128>}, {pipeline_mode = #tpu.pipeline_mode<synchronous>, transform_indices = @transform_6, window_bounds = array<i64: 1, 128>}, {pipeline_mode = #tpu.pipeline_mode<synchronous>, transform_indices = @transform_7, window_bounds = array<i64: 128, 128>}, {pipeline_mode = #tpu.pipeline_mode<synchronous>, transform_indices = @transform_8, window_bounds = array<i64: 1, 128>}, {pipeline_mode = #tpu.pipeline_mode<synchronous>, transform_indices = @transform_9, window_bounds = array<i64: 128, 128>}, {pipeline_mode = #tpu.pipeline_mode<synchronous>, transform_indices = @transform_10, window_bounds = array<i64: 1, 128>}, {pipeline_mode = #tpu.pipeline_mode<synchronous>, transform_indices = @transform_11, window_bounds = array<i64: 128, 128>}, {pipeline_mode = #tpu.pipeline_mode<synchronous>, transform_indices = @transform_12, window_bounds = array<i64: 1, 128>}, {transform_indices = @transform_13, window_bounds = array<i64: 56, 65>}]} {
    %c0 = arith.constant 0 : index
    %c0_0 = arith.constant 0 : index
    %0 = vector.load %arg1[%c0, %c0_0] : memref<56x65xf32, #tpu.memory_space<vmem>>, vector<56x65xf32>
    %1 = arith.truncf %0 : vector<56x65xf32> to vector<56x65xbf16>
    %c0_1 = arith.constant 0 : index
    %c0_2 = arith.constant 0 : index
    %2 = vector.load %arg2[%c0_1, %c0_2] : memref<65x128xbf16, #tpu.memory_space<vmem>>, vector<65x128xbf16>
    %cst = arith.constant dense<0.000000e+00> : vector<56x128xf32>
    %3 = tpu.matmul %1, %2, %cst {dimension_numbers = #tpu.dot_dimension_numbers<[1], [0], [0], [1], [0, 0, 1, 1], [], []>} : vector<56x65xbf16>, vector<65x128xbf16>, vector<56x128xf32> -> vector<56x128xf32>
    %c0_3 = arith.constant 0 : index
    %c0_4 = arith.constant 0 : index
    %4 = vector.load %arg3[%c0_3, %c0_4] : memref<1x128xf32, #tpu.memory_space<vmem>>, vector<1x128xf32>
    %5 = vector.broadcast %4 : vector<1x128xf32> to vector<56x128xf32>
    %6 = arith.addf %3, %5 : vector<56x128xf32>
    %7 = arith.truncf %6 : vector<56x128xf32> to vector<56x128xbf16>
    %cst_5 = arith.constant 1.000980e-02 : bf16
    %8 = vector.broadcast %cst_5 : bf16 to vector<56x128xbf16>
    %9 = arith.mulf %8, %7 : vector<56x128xbf16>
    %10 = arith.maximumf %7, %9 : vector<56x128xbf16>
    %c0_6 = arith.constant 0 : index
    %c0_7 = arith.constant 0 : index
    %11 = vector.load %arg4[%c0_6, %c0_7] : memref<128x128xbf16, #tpu.memory_space<vmem>>, vector<128x128xbf16>
    %cst_8 = arith.constant dense<0.000000e+00> : vector<56x128xf32>
    %12 = tpu.matmul %10, %11, %cst_8 {dimension_numbers = #tpu.dot_dimension_numbers<[1], [0], [0], [1], [0, 0, 1, 1], [], []>} : vector<56x128xbf16>, vector<128x128xbf16>, vector<56x128xf32> -> vector<56x128xf32>
    %c0_9 = arith.constant 0 : index
    %c0_10 = arith.constant 0 : index
    %13 = vector.load %arg5[%c0_9, %c0_10] : memref<1x128xf32, #tpu.memory_space<vmem>>, vector<1x128xf32>
    %14 = vector.broadcast %13 : vector<1x128xf32> to vector<56x128xf32>
    %15 = arith.addf %12, %14 : vector<56x128xf32>
    %16 = arith.truncf %15 : vector<56x128xf32> to vector<56x128xbf16>
    %cst_11 = arith.constant 1.000980e-02 : bf16
    %17 = vector.broadcast %cst_11 : bf16 to vector<56x128xbf16>
    %18 = arith.mulf %17, %16 : vector<56x128xbf16>
    %19 = arith.maximumf %16, %18 : vector<56x128xbf16>
    %c0_12 = arith.constant 0 : index
    %c0_13 = arith.constant 0 : index
    %20 = vector.load %arg6[%c0_12, %c0_13] : memref<128x128xbf16, #tpu.memory_space<vmem>>, vector<128x128xbf16>
    %cst_14 = arith.constant dense<0.000000e+00> : vector<56x128xf32>
    %21 = tpu.matmul %19, %20, %cst_14 {dimension_numbers = #tpu.dot_dimension_numbers<[1], [0], [0], [1], [0, 0, 1, 1], [], []>} : vector<56x128xbf16>, vector<128x128xbf16>, vector<56x128xf32> -> vector<56x128xf32>
    %c0_15 = arith.constant 0 : index
    %c0_16 = arith.constant 0 : index
    %22 = vector.load %arg7[%c0_15, %c0_16] : memref<1x128xf32, #tpu.memory_space<vmem>>, vector<1x128xf32>
    %23 = vector.broadcast %22 : vector<1x128xf32> to vector<56x128xf32>
    %24 = arith.addf %21, %23 : vector<56x128xf32>
    %25 = arith.truncf %24 : vector<56x128xf32> to vector<56x128xbf16>
    %cst_17 = arith.constant 1.000980e-02 : bf16
    %26 = vector.broadcast %cst_17 : bf16 to vector<56x128xbf16>
    %27 = arith.mulf %26, %25 : vector<56x128xbf16>
    %28 = arith.maximumf %25, %27 : vector<56x128xbf16>
    %c0_18 = arith.constant 0 : index
    %c0_19 = arith.constant 0 : index
    %29 = vector.load %arg8[%c0_18, %c0_19] : memref<128x128xbf16, #tpu.memory_space<vmem>>, vector<128x128xbf16>
    %cst_20 = arith.constant dense<0.000000e+00> : vector<56x128xf32>
    %30 = tpu.matmul %28, %29, %cst_20 {dimension_numbers = #tpu.dot_dimension_numbers<[1], [0], [0], [1], [0, 0, 1, 1], [], []>} : vector<56x128xbf16>, vector<128x128xbf16>, vector<56x128xf32> -> vector<56x128xf32>
    %c0_21 = arith.constant 0 : index
    %c0_22 = arith.constant 0 : index
    %31 = vector.load %arg9[%c0_21, %c0_22] : memref<1x128xf32, #tpu.memory_space<vmem>>, vector<1x128xf32>
    %32 = vector.broadcast %31 : vector<1x128xf32> to vector<56x128xf32>
    %33 = arith.addf %30, %32 : vector<56x128xf32>
    %34 = arith.truncf %33 : vector<56x128xf32> to vector<56x128xbf16>
    %cst_23 = arith.constant 1.000980e-02 : bf16
    %35 = vector.broadcast %cst_23 : bf16 to vector<56x128xbf16>
    %36 = arith.mulf %35, %34 : vector<56x128xbf16>
    %37 = arith.maximumf %34, %36 : vector<56x128xbf16>
    %c0_24 = arith.constant 0 : index
    %c0_25 = arith.constant 0 : index
    %38 = vector.load %arg10[%c0_24, %c0_25] : memref<128x128xbf16, #tpu.memory_space<vmem>>, vector<128x128xbf16>
    %cst_26 = arith.constant dense<0.000000e+00> : vector<56x128xf32>
    %39 = tpu.matmul %37, %38, %cst_26 {dimension_numbers = #tpu.dot_dimension_numbers<[1], [0], [0], [1], [0, 0, 1, 1], [], []>} : vector<56x128xbf16>, vector<128x128xbf16>, vector<56x128xf32> -> vector<56x128xf32>
    %c0_27 = arith.constant 0 : index
    %c0_28 = arith.constant 0 : index
    %40 = vector.load %arg11[%c0_27, %c0_28] : memref<1x128xf32, #tpu.memory_space<vmem>>, vector<1x128xf32>
    %41 = vector.broadcast %40 : vector<1x128xf32> to vector<56x128xf32>
    %42 = arith.addf %39, %41 : vector<56x128xf32>
    %43 = arith.truncf %42 : vector<56x128xf32> to vector<56x128xbf16>
    %cst_29 = arith.constant 1.000980e-02 : bf16
    %44 = vector.broadcast %cst_29 : bf16 to vector<56x128xbf16>
    %45 = arith.mulf %44, %43 : vector<56x128xbf16>
    %46 = arith.maximumf %43, %45 : vector<56x128xbf16>
    %c0_30 = arith.constant 0 : index
    %c0_31 = arith.constant 0 : index
    %47 = vector.load %arg12[%c0_30, %c0_31] : memref<128x128xbf16, #tpu.memory_space<vmem>>, vector<128x128xbf16>
    %cst_32 = arith.constant dense<0.000000e+00> : vector<56x128xf32>
    %48 = tpu.matmul %46, %47, %cst_32 {dimension_numbers = #tpu.dot_dimension_numbers<[1], [0], [0], [1], [0, 0, 1, 1], [], []>} : vector<56x128xbf16>, vector<128x128xbf16>, vector<56x128xf32> -> vector<56x128xf32>
    %c0_33 = arith.constant 0 : index
    %c0_34 = arith.constant 0 : index
    %49 = vector.load %arg13[%c0_33, %c0_34] : memref<1x128xf32, #tpu.memory_space<vmem>>, vector<1x128xf32>
    %50 = vector.broadcast %49 : vector<1x128xf32> to vector<56x128xf32>
    %51 = arith.addf %48, %50 : vector<56x128xf32>
    %cst_35 = arith.constant 0.00999999977 : f32
    %52 = vector.broadcast %cst_35 : f32 to vector<56x128xf32>
    %53 = arith.mulf %52, %51 : vector<56x128xf32>
    %54 = arith.maximumf %51, %53 : vector<56x128xf32>
    %55 = vector.extract_strided_slice %54 {offsets = [0, 0], sizes = [56, 65], strides = [1, 1]} : vector<56x128xf32> to vector<56x65xf32>
    %c0_36 = arith.constant 0 : index
    %c0_37 = arith.constant 0 : index
    %56 = vector.load %arg14[%c0_36, %c0_37] : memref<56x65xf32, #tpu.memory_space<vmem>>, vector<56x65xf32>
    tpu.vector_store %arg14[%c0_36, %c0_37], %55 {strides = array<i32>} : memref<56x65xf32, #tpu.memory_space<vmem>>, vector<56x65xf32>,
    return
  }
  func.func @transform_0(%arg0: i32) -> (i32, i32) {
    %c0_i32 = arith.constant 0 : i32
    %c0_i32_0 = arith.constant 0 : i32
    return %arg0, %c0_i32 : i32, i32
  }
  func.func @transform_1(%arg0: i32) -> (i32, i32) {
    %c0_i32 = arith.constant 0 : i32
    %c0_i32_0 = arith.constant 0 : i32
    %c0_i32_1 = arith.constant 0 : i32
    return %c0_i32, %c0_i32_0 : i32, i32
  }
  func.func @transform_2(%arg0: i32) -> (i32, i32) {
    %c0_i32 = arith.constant 0 : i32
    %c0_i32_0 = arith.constant 0 : i32
    %c0_i32_1 = arith.constant 0 : i32
    return %c0_i32, %c0_i32_0 : i32, i32
  }
  func.func @transform_3(%arg0: i32) -> (i32, i32) {
    %c0_i32 = arith.constant 0 : i32
    %c0_i32_0 = arith.constant 0 : i32
    %c0_i32_1 = arith.constant 0 : i32
    return %c0_i32, %c0_i32_0 : i32, i32
  }
  func.func @transform_4(%arg0: i32) -> (i32, i32) {
    %c0_i32 = arith.constant 0 : i32
    %c0_i32_0 = arith.constant 0 : i32
    %c0_i32_1 = arith.constant 0 : i32
    return %c0_i32, %c0_i32_0 : i32, i32
  }
  func.func @transform_5(%arg0: i32) -> (i32, i32) {
    %c0_i32 = arith.constant 0 : i32
    %c0_i32_0 = arith.constant 0 : i32
    %c0_i32_1 = arith.constant 0 : i32
    return %c0_i32, %c0_i32_0 : i32, i32
  }
  func.func @transform_6(%arg0: i32) -> (i32, i32) {
    %c0_i32 = arith.constant 0 : i32
    %c0_i32_0 = arith.constant 0 : i32
    %c0_i32_1 = arith.constant 0 : i32
    return %c0_i32, %c0_i32_0 : i32, i32
  }
  func.func @transform_7(%arg0: i32) -> (i32, i32) {
    %c0_i32 = arith.constant 0 : i32
    %c0_i32_0 = arith.constant 0 : i32
    %c0_i32_1 = arith.constant 0 : i32
    return %c0_i32, %c0_i32_0 : i32, i32
  }
  func.func @transform_8(%arg0: i32) -> (i32, i32) {
    %c0_i32 = arith.constant 0 : i32
    %c0_i32_0 = arith.constant 0 : i32
    %c0_i32_1 = arith.constant 0 : i32
    return %c0_i32, %c0_i32_0 : i32, i32
  }
  func.func @transform_9(%arg0: i32) -> (i32, i32) {
    %c0_i32 = arith.constant 0 : i32
    %c0_i32_0 = arith.constant 0 : i32
    %c0_i32_1 = arith.constant 0 : i32
    return %c0_i32, %c0_i32_0 : i32, i32
  }
  func.func @transform_10(%arg0: i32) -> (i32, i32) {
    %c0_i32 = arith.constant 0 : i32
    %c0_i32_0 = arith.constant 0 : i32
    %c0_i32_1 = arith.constant 0 : i32
    return %c0_i32, %c0_i32_0 : i32, i32
  }
  func.func @transform_11(%arg0: i32) -> (i32, i32) {
    %c0_i32 = arith.constant 0 : i32
    %c0_i32_0 = arith.constant 0 : i32
    %c0_i32_1 = arith.constant 0 : i32
    return %c0_i32, %c0_i32_0 : i32, i32
  }
  func.func @transform_12(%arg0: i32) -> (i32, i32) {
    %c0_i32 = arith.constant 0 : i32
    %c0_i32_0 = arith.constant 0 : i32
    %c0_i32_1 = arith.constant 0 : i32
    return %c0_i32, %c0_i32_0 : i32, i32
  }
  func.func @transform_13(%arg0: i32) -> (i32, i32) {
    %c0_i32 = arith.constant 0 : i32
    %c0_i32_0 = arith.constant 0 : i32
    return %arg0, %c0_i32 : i32, i32
  }
}

</mosaic_0001>

<llo_original>
// kernel: _autoencoder_jit.1
$region0: #{_autoencoder_jit.1}
  #allocation0 [shape = 'u32[]', space=smem, size = 0x4, offset = 0x4, fixed_abs, tag = 'smem constant byte address 0x4 - core index']
  #allocation1 [shape = 'u32[144,128]{1,0:T(1,128)}', space=vmem, size = 0x12000, scoped, tag = 'internal scratch']
  %s0 = inlined_call_operand.vmem [shape: f32[112,65], index: 0, kind: input, shape index: {}]
  %s1 = inlined_call_operand.vmem [shape: bf16[65,128], index: 1, kind: input, shape index: {}]
  %s2 = inlined_call_operand.vmem [shape: f32[1,128], index: 2, kind: input, shape index: {}]
  %s3 = inlined_call_operand.vmem [shape: bf16[128,128], index: 3, kind: input, shape index: {}]
  %s4 = inlined_call_operand.vmem [shape: f32[1,128], index: 4, kind: input, shape index: {}]
  %s5 = inlined_call_operand.vmem [shape: bf16[128,128], index: 5, kind: input, shape index: {}]
  %s6 = inlined_call_operand.vmem [shape: f32[1,128], index: 6, kind: input, shape index: {}]
  %s7 = inlined_call_operand.vmem [shape: bf16[128,128], index: 7, kind: input, shape index: {}]
  %s8 = inlined_call_operand.vmem [shape: f32[1,128], index: 8, kind: input, shape index: {}]
  %s9 = inlined_call_operand.vmem [shape: bf16[128,128], index: 9, kind: input, shape index: {}]
  %s10 = inlined_call_operand.vmem [shape: f32[1,128], index: 10, kind: input, shape index: {}]
  %s11 = inlined_call_operand.vmem [shape: bf16[128,128], index: 11, kind: input, shape index: {}]
  %s12 = inlined_call_operand.vmem [shape: f32[1,128], index: 12, kind: input, shape index: {}]
  %s13 = inlined_call_operand.vmem [shape: f32[112,65], index: 13, kind: output, shape index: {}]
  %s14 = sld [smem:[#allocation0]]
  $region85: #{_autoencoder_jit.1} parent=0
    _
  %s16 = ssub.s32 1, %s14
  %s17 = scalar_select 0, %s16, %s14
  loop: start=0, step=1, limit=4
  $region2: #{_autoencoder_jit.1} parent=0 // loop_pre_header
    _
  $region3: #{_autoencoder_jit.1} parent=0 // loop_header
    %s19 = sphi 0, %s23
    %p20 = scmp.ge.s32.totalorder %s19, 4
    %s29 = sphi 0, %s31
    %s32 = sphi 0, %s29
    %s33 = sphi 0, %s32
    %s49 = sphi 0, %s33
    %s53 = sphi 0, %s53
    %s55 = sphi 0, %s53
    %s56 = sphi 0, %s55
    %s70 = sphi 0, %s56
    %s74 = sphi 0, %s74
    %s76 = sphi 0, %s74
    %s77 = sphi 0, %s76
    %s91 = sphi 0, %s77
    %s95 = sphi 0, %s95
    %s97 = sphi 0, %s95
    %s98 = sphi 0, %s97
    %s112 = sphi 0, %s98
    %s116 = sphi 0, %s116
    %s118 = sphi 0, %s116
    %s119 = sphi 0, %s118
    %s133 = sphi 0, %s119
    %s137 = sphi 0, %s137
    %s139 = sphi 0, %s137
    %s140 = sphi 0, %s139
    %s154 = sphi 0, %s140
    %s158 = sphi 0, %s158
    %s160 = sphi 0, %s158
    %s161 = sphi 0, %s160
    %s175 = sphi 0, %s161
    %s179 = sphi 0, %s179
    %s181 = sphi 0, %s179
    %s182 = sphi 0, %s181
    %s196 = sphi 0, %s182
    %s200 = sphi 0, %s200
    %s202 = sphi 0, %s200
    %s203 = sphi 0, %s202
    %s217 = sphi 0, %s203
    %s221 = sphi 0, %s221
    %s223 = sphi 0, %s221
    %s224 = sphi 0, %s223
    %s238 = sphi 0, %s224
    %s242 = sphi 0, %s242
    %s244 = sphi 0, %s242
    %s245 = sphi 0, %s244
    %s259 = sphi 0, %s245
    %s263 = sphi 0, %s263
    %s265 = sphi 0, %s263
    %s266 = sphi 0, %s265
    %s280 = sphi 0, %s266
    %s284 = sphi 0, %s284
    %s286 = sphi 0, %s284
    %s287 = sphi 0, %s286
    %s301 = sphi 0, %s287
    %s307 = sphi 0, %s309
    %s310 = sphi 0, %s307
    %s311 = sphi 0, %s310
    %s327 = sphi 0, %s311
  $region4: #{_autoencoder_jit.1} parent=0 // loop_header_branch
    %22 = sbr.rel (%p20) target = $region8
  $region5: #{_autoencoder_jit.1} parent=0 // loop_body
    %s24 = ssub.s32 %s19, 1
    %s25 = ssub.s32 %s19, 2
    %s26 = sadd.s32 %s19, 1
    %s27 = ssub.s32 %s19, %s26
    %p28 = scmp.eq.s32.totalorder %s27, 0
    %s30 = sadd.s32 %s29, 1
    %s31 = scalar_select %p28, %s29, %s30
    %p34 = pneg %p28
    %p35 = scmp.eq.s32.totalorder %s19, 1
    %p36 = por %p34, %p35
    %p37 = scmp.ne.s32.totalorder %s29, %s32
    %p38 = scmp.eq.s32.totalorder %s19, 0
    %p39 = por %p37, %p38
    %p40 = scmp.ne.s32.totalorder %s29, %s32
    %p41 = scmp.eq.s32.totalorder %s24, 1
    %p42 = por %p40, %p41
    %p43 = scmp.ne.s32.totalorder %s32, %s33
    %p44 = scmp.eq.s32.totalorder %s24, 0
    %p45 = por %p43, %p44
    %p46 = scmp.ne.s32.totalorder %s32, %s33
    %p47 = scmp.eq.s32.totalorder %s25, 1
    %p48 = por %p46, %p47
    %p50 = scmp.ne.s32.totalorder %s33, %s49
    %p51 = scmp.eq.s32.totalorder %s25, 0
    %p52 = por %p50, %p51
    %s54 = sadd.s32 %s53, 1
    %p57 = scmp.eq.s32.totalorder %s19, 1
    %p58 = scmp.ne.s32.totalorder %s53, %s55
    %p59 = scmp.eq.s32.totalorder %s19, 0
    %p60 = por %p58, %p59
    %p61 = scmp.ne.s32.totalorder %s53, %s55
    %p62 = scmp.eq.s32.totalorder %s24, 1
    %p63 = por %p61, %p62
    %p64 = scmp.ne.s32.totalorder %s55, %s56
    %p65 = scmp.eq.s32.totalorder %s24, 0
    %p66 = por %p64, %p65
    %p67 = scmp.ne.s32.totalorder %s55, %s56
    %p68 = scmp.eq.s32.totalorder %s25, 1
    %p69 = por %p67, %p68
    %p71 = scmp.ne.s32.totalorder %s56, %s70
    %p72 = scmp.eq.s32.totalorder %s25, 0
    %p73 = por %p71, %p72
    %s75 = sadd.s32 %s74, 1
    %p78 = scmp.eq.s32.totalorder %s19, 1
    %p79 = scmp.ne.s32.totalorder %s74, %s76
    %p80 = scmp.eq.s32.totalorder %s19, 0
    %p81 = por %p79, %p80
    %p82 = scmp.ne.s32.totalorder %s74, %s76
    %p83 = scmp.eq.s32.totalorder %s24, 1
    %p84 = por %p82, %p83
    %p85 = scmp.ne.s32.totalorder %s76, %s77
    %p86 = scmp.eq.s32.totalorder %s24, 0
    %p87 = por %p85, %p86
    %p88 = scmp.ne.s32.totalorder %s76, %s77
    %p89 = scmp.eq.s32.totalorder %s25, 1
    %p90 = por %p88, %p89
    %p92 = scmp.ne.s32.totalorder %s77, %s91
    %p93 = scmp.eq.s32.totalorder %s25, 0
    %p94 = por %p92, %p93
    %s96 = sadd.s32 %s95, 1
    %p99 = scmp.eq.s32.totalorder %s19, 1
    %p100 = scmp.ne.s32.totalorder %s95, %s97
    %p101 = scmp.eq.s32.totalorder %s19, 0
    %p102 = por %p100, %p101
    %p103 = scmp.ne.s32.totalorder %s95, %s97
    %p104 = scmp.eq.s32.totalorder %s24, 1
    %p105 = por %p103, %p104
    %p106 = scmp.ne.s32.totalorder %s97, %s98
    %p107 = scmp.eq.s32.totalorder %s24, 0
    %p108 = por %p106, %p107
    %p109 = scmp.ne.s32.totalorder %s97, %s98
    %p110 = scmp.eq.s32.totalorder %s25, 1
    %p111 = por %p109, %p110
    %p113 = scmp.ne.s32.totalorder %s98, %s112
    %p114 = scmp.eq.s32.totalorder %s25, 0
    %p115 = por %p113, %p114
    %s117 = sadd.s32 %s116, 1
    %p120 = scmp.eq.s32.totalorder %s19, 1
    %p121 = scmp.ne.s32.totalorder %s116, %s118
    %p122 = scmp.eq.s32.totalorder %s19, 0
    %p123 = por %p121, %p122
    %p124 = scmp.ne.s32.totalorder %s116, %s118
    %p125 = scmp.eq.s32.totalorder %s24, 1
    %p126 = por %p124, %p125
    %p127 = scmp.ne.s32.totalorder %s118, %s119
    %p128 = scmp.eq.s32.totalorder %s24, 0
    %p129 = por %p127, %p128
    %p130 = scmp.ne.s32.totalorder %s118, %s119
    %p131 = scmp.eq.s32.totalorder %s25, 1
    %p132 = por %p130, %p131
    %p134 = scmp.ne.s32.totalorder %s119, %s133
    %p135 = scmp.eq.s32.totalorder %s25, 0
    %p136 = por %p134, %p135
    %s138 = sadd.s32 %s137, 1
    %p141 = scmp.eq.s32.totalorder %s19, 1
    %p142 = scmp.ne.s32.totalorder %s137, %s139
    %p143 = scmp.eq.s32.totalorder %s19, 0
    %p144 = por %p142, %p143
    %p145 = scmp.ne.s32.totalorder %s137, %s139
    %p146 = scmp.eq.s32.totalorder %s24, 1
    %p147 = por %p145, %p146
    %p148 = scmp.ne.s32.totalorder %s139, %s140
    %p149 = scmp.eq.s32.totalorder %s24, 0
    %p150 = por %p148, %p149
    %p151 = scmp.ne.s32.totalorder %s139, %s140
    %p152 = scmp.eq.s32.totalorder %s25, 1
    %p153 = por %p151, %p152
    %p155 = scmp.ne.s32.totalorder %s140, %s154
    %p156 = scmp.eq.s32.totalorder %s25, 0
    %p157 = por %p155, %p156
    %s159 = sadd.s32 %s158, 1
    %p162 = scmp.eq.s32.totalorder %s19, 1
    %p163 = scmp.ne.s32.totalorder %s158, %s160
    %p164 = scmp.eq.s32.totalorder %s19, 0
    %p165 = por %p163, %p164
    %p166 = scmp.ne.s32.totalorder %s158, %s160
    %p167 = scmp.eq.s32.totalorder %s24, 1
    %p168 = por %p166, %p167
    %p169 = scmp.ne.s32.totalorder %s160, %s161
    %p170 = scmp.eq.s32.totalorder %s24, 0
    %p171 = por %p169, %p170
    %p172 = scmp.ne.s32.totalorder %s160, %s161
    %p173 = scmp.eq.s32.totalorder %s25, 1
    %p174 = por %p172, %p173
    %p176 = scmp.ne.s32.totalorder %s161, %s175
    %p177 = scmp.eq.s32.totalorder %s25, 0
    %p178 = por %p176, %p177
    %s180 = sadd.s32 %s179, 1
    %p183 = scmp.eq.s32.totalorder %s19, 1
    %p184 = scmp.ne.s32.totalorder %s179, %s181
    %p185 = scmp.eq.s32.totalorder %s19, 0
    %p186 = por %p184, %p185
    %p187 = scmp.ne.s32.totalorder %s179, %s181
    %p188 = scmp.eq.s32.totalorder %s24, 1
    %p189 = por %p187, %p188
    %p190 = scmp.ne.s32.totalorder %s181, %s182
    %p191 = scmp.eq.s32.totalorder %s24, 0
    %p192 = por %p190, %p191
    %p193 = scmp.ne.s32.totalorder %s181, %s182
    %p194 = scmp.eq.s32.totalorder %s25, 1
    %p195 = por %p193, %p194
    %p197 = scmp.ne.s32.totalorder %s182, %s196
    %p198 = scmp.eq.s32.totalorder %s25, 0
    %p199 = por %p197, %p198
    %s201 = sadd.s32 %s200, 1
    %p204 = scmp.eq.s32.totalorder %s19, 1
    %p205 = scmp.ne.s32.totalorder %s200, %s202
    %p206 = scmp.eq.s32.totalorder %s19, 0
    %p207 = por %p205, %p206
    %p208 = scmp.ne.s32.totalorder %s200, %s202
    %p209 = scmp.eq.s32.totalorder %s24, 1
    %p210 = por %p208, %p209
    %p211 = scmp.ne.s32.totalorder %s202, %s203
    %p212 = scmp.eq.s32.totalorder %s24, 0
    %p213 = por %p211, %p212
    %p214 = scmp.ne.s32.totalorder %s202, %s203
    %p215 = scmp.eq.s32.totalorder %s25, 1
    %p216 = por %p214, %p215
    %p218 = scmp.ne.s32.totalorder %s203, %s217
    %p219 = scmp.eq.s32.totalorder %s25, 0
    %p220 = por %p218, %p219
    %s222 = sadd.s32 %s221, 1
    %p225 = scmp.eq.s32.totalorder %s19, 1
    %p226 = scmp.ne.s32.totalorder %s221, %s223
    %p227 = scmp.eq.s32.totalorder %s19, 0
    %p228 = por %p226, %p227
    %p229 = scmp.ne.s32.totalorder %s221, %s223
    %p230 = scmp.eq.s32.totalorder %s24, 1
    %p231 = por %p229, %p230
    %p232 = scmp.ne.s32.totalorder %s223, %s224
    %p233 = scmp.eq.s32.totalorder %s24, 0
    %p234 = por %p232, %p233
    %p235 = scmp.ne.s32.totalorder %s223, %s224
    %p236 = scmp.eq.s32.totalorder %s25, 1
    %p237 = por %p235, %p236
    %p239 = scmp.ne.s32.totalorder %s224, %s238
    %p240 = scmp.eq.s32.totalorder %s25, 0
    %p241 = por %p239, %p240
    %s243 = sadd.s32 %s242, 1
    %p246 = scmp.eq.s32.totalorder %s19, 1
    %p247 = scmp.ne.s32.totalorder %s242, %s244
    %p248 = scmp.eq.s32.totalorder %s19, 0
    %p249 = por %p247, %p248
    %p250 = scmp.ne.s32.totalorder %s242, %s244
    %p251 = scmp.eq.s32.totalorder %s24, 1
    %p252 = por %p250, %p251
    %p253 = scmp.ne.s32.totalorder %s244, %s245
    %p254 = scmp.eq.s32.totalorder %s24, 0
    %p255 = por %p253, %p254
    %p256 = scmp.ne.s32.totalorder %s244, %s245
    %p257 = scmp.eq.s32.totalorder %s25, 1
    %p258 = por %p256, %p257
    %p260 = scmp.ne.s32.totalorder %s245, %s259
    %p261 = scmp.eq.s32.totalorder %s25, 0
    %p262 = por %p260, %p261
    %s264 = sadd.s32 %s263, 1
    %p267 = scmp.eq.s32.totalorder %s19, 1
    %p268 = scmp.ne.s32.totalorder %s263, %s265
    %p269 = scmp.eq.s32.totalorder %s19, 0
    %p270 = por %p268, %p269
    %p271 = scmp.ne.s32.totalorder %s263, %s265
    %p272 = scmp.eq.s32.totalorder %s24, 1
    %p273 = por %p271, %p272
    %p274 = scmp.ne.s32.totalorder %s265, %s266
    %p275 = scmp.eq.s32.totalorder %s24, 0
    %p276 = por %p274, %p275
    %p277 = scmp.ne.s32.totalorder %s265, %s266
    %p278 = scmp.eq.s32.totalorder %s25, 1
    %p279 = por %p277, %p278
    %p281 = scmp.ne.s32.totalorder %s266, %s280
    %p282 = scmp.eq.s32.totalorder %s25, 0
    %p283 = por %p281, %p282
    %s285 = sadd.s32 %s284, 1
    %p288 = scmp.eq.s32.totalorder %s19, 1
    %p289 = scmp.ne.s32.totalorder %s284, %s286
    %p290 = scmp.eq.s32.totalorder %s19, 0
    %p291 = por %p289, %p290
    %p292 = scmp.ne.s32.totalorder %s284, %s286
    %p293 = scmp.eq.s32.totalorder %s24, 1
    %p294 = por %p292, %p293
    %p295 = scmp.ne.s32.totalorder %s286, %s287
    %p296 = scmp.eq.s32.totalorder %s24, 0
    %p297 = por %p295, %p296
    %p298 = scmp.ne.s32.totalorder %s286, %s287
    %p299 = scmp.eq.s32.totalorder %s25, 1
    %p300 = por %p298, %p299
    %p302 = scmp.ne.s32.totalorder %s287, %s301
    %p303 = scmp.eq.s32.totalorder %s25, 0
    %p304 = por %p302, %p303
    %s305 = ssub.s32 %s19, %s26
    %p306 = scmp.eq.s32.totalorder %s305, 0
    %s308 = sadd.s32 %s307, 1
    %s309 = scalar_select %p306, %s307, %s308
    %p312 = pneg %p306
    %p313 = scmp.eq.s32.totalorder %s19, 1
    %p314 = por %p312, %p313
    %p315 = scmp.ne.s32.totalorder %s307, %s310
    %p316 = scmp.eq.s32.totalorder %s19, 0
    %p317 = por %p315, %p316
    %p318 = scmp.ne.s32.totalorder %s307, %s310
    %p319 = scmp.eq.s32.totalorder %s24, 1
    %p320 = por %p318, %p319
    %p321 = scmp.ne.s32.totalorder %s310, %s311
    %p322 = scmp.eq.s32.totalorder %s24, 0
    %p323 = por %p321, %p322
    %p324 = scmp.ne.s32.totalorder %s310, %s311
    %p325 = scmp.eq.s32.totalorder %s25, 1
    %p326 = por %p324, %p325
    %p328 = scmp.ne.s32.totalorder %s311, %s327
    %p329 = scmp.eq.s32.totalorder %s25, 0
    %p330 = por %p328, %p329
    %p331 = scmp.le.s32.totalorder 1, %s19
    %p332 = scmp.lt.s32.totalorder %s19, 3
    %p333 = pnand %p331, %p332
    %p334 = pneg %p333
    // Predicated region
    $region9: #{_autoencoder_jit.1} parent=5 // pred_check
      _
    $region10: #{_autoencoder_jit.1} parent=5 // pred_check_branch
      %336 = sbr.rel (%p333) target = $region12
    $region11: #{_autoencoder_jit.1} parent=5 // pred_region
      %s337 = ssub.s32 %s19, 1
      // Predicated region
      $region13: #{_autoencoder_jit.1} parent=11 // pred_check
        %p338 = pneg %p66
      $region14: #{_autoencoder_jit.1} parent=11 // pred_check_branch
        %340 = sbr.rel (%p338) target = $region16
      $region15: #{_autoencoder_jit.1} parent=11 // pred_region
        _
      $region16: #{_autoencoder_jit.1} parent=11 // pred_fallthru
        _
      // Predicated region
      $region17: #{_autoencoder_jit.1} parent=11 // pred_check
        %p341 = pneg %p87
      $region18: #{_autoencoder_jit.1} parent=11 // pred_check_branch
        %343 = sbr.rel (%p341) target = $region20
      $region19: #{_autoencoder_jit.1} parent=11 // pred_region
        _
      $region20: #{_autoencoder_jit.1} parent=11 // pred_fallthru
        _
      // Predicated region
      $region21: #{_autoencoder_jit.1} parent=11 // pred_check
        %p344 = pneg %p108
      $region22: #{_autoencoder_jit.1} parent=11 // pred_check_branch
        %346 = sbr.rel (%p344) target = $region24
      $region23: #{_autoencoder_jit.1} parent=11 // pred_region
        _
      $region24: #{_autoencoder_jit.1} parent=11 // pred_fallthru
        _
      // Predicated region
      $region25: #{_autoencoder_jit.1} parent=11 // pred_check
        %p347 = pneg %p129
      $region26: #{_autoencoder_jit.1} parent=11 // pred_check_branch
        %349 = sbr.rel (%p347) target = $region28
      $region27: #{_autoencoder_jit.1} parent=11 // pred_region
        _
      $region28: #{_autoencoder_jit.1} parent=11 // pred_fallthru
        _
      // Predicated region
      $region29: #{_autoencoder_jit.1} parent=11 // pred_check
        %p350 = pneg %p150
      $region30: #{_autoencoder_jit.1} parent=11 // pred_check_branch
        %352 = sbr.rel (%p350) target = $region32
      $region31: #{_autoencoder_jit.1} parent=11 // pred_region
        _
      $region32: #{_autoencoder_jit.1} parent=11 // pred_fallthru
        _
      // Predicated region
      $region33: #{_autoencoder_jit.1} parent=11 // pred_check
        %p353 = pneg %p171
      $region34: #{_autoencoder_jit.1} parent=11 // pred_check_branch
        %355 = sbr.rel (%p353) target = $region36
      $region35: #{_autoencoder_jit.1} parent=11 // pred_region
        _
      $region36: #{_autoencoder_jit.1} parent=11 // pred_fallthru
        _
      // Predicated region
      $region37: #{_autoencoder_jit.1} parent=11 // pred_check
        %p356 = pneg %p192
      $region38: #{_autoencoder_jit.1} parent=11 // pred_check_branch
        %358 = sbr.rel (%p356) target = $region40
      $region39: #{_autoencoder_jit.1} parent=11 // pred_region
        _
      $region40: #{_autoencoder_jit.1} parent=11 // pred_fallthru
        _
      // Predicated region
      $region41: #{_autoencoder_jit.1} parent=11 // pred_check
        %p359 = pneg %p213
      $region42: #{_autoencoder_jit.1} parent=11 // pred_check_branch
        %361 = sbr.rel (%p359) target = $region44
      $region43: #{_autoencoder_jit.1} parent=11 // pred_region
        _
      $region44: #{_autoencoder_jit.1} parent=11 // pred_fallthru
        _
      // Predicated region
      $region45: #{_autoencoder_jit.1} parent=11 // pred_check
        %p362 = pneg %p234
      $region46: #{_autoencoder_jit.1} parent=11 // pred_check_branch
        %364 = sbr.rel (%p362) target = $region48
      $region47: #{_autoencoder_jit.1} parent=11 // pred_region
        _
      $region48: #{_autoencoder_jit.1} parent=11 // pred_fallthru
        _
      // Predicated region
      $region49: #{_autoencoder_jit.1} parent=11 // pred_check
        %p365 = pneg %p255
      $region50: #{_autoencoder_jit.1} parent=11 // pred_check_branch
        %367 = sbr.rel (%p365) target = $region52
      $region51: #{_autoencoder_jit.1} parent=11 // pred_region
        _
      $region52: #{_autoencoder_jit.1} parent=11 // pred_fallthru
        _
      // Predicated region
      $region53: #{_autoencoder_jit.1} parent=11 // pred_check
        %p368 = pneg %p276
      $region54: #{_autoencoder_jit.1} parent=11 // pred_check_branch
        %370 = sbr.rel (%p368) target = $region56
      $region55: #{_autoencoder_jit.1} parent=11 // pred_region
        _
      $region56: #{_autoencoder_jit.1} parent=11 // pred_fallthru
        _
      // Predicated region
      $region57: #{_autoencoder_jit.1} parent=11 // pred_check
        %p371 = pneg %p297
      $region58: #{_autoencoder_jit.1} parent=11 // pred_check_branch
        %373 = sbr.rel (%p371) target = $region60
      $region59: #{_autoencoder_jit.1} parent=11 // pred_region
        _
      $region60: #{_autoencoder_jit.1} parent=11 // pred_fallthru
        _
    $region12: #{_autoencoder_jit.1} parent=5 // pred_fallthru
      _
    %p374 = scmp.lt.s32.totalorder %s19, 2
    // Predicated region
    $region61: #{_autoencoder_jit.1} parent=5 // pred_check
      %p375 = pneg %p374
    $region62: #{_autoencoder_jit.1} parent=5 // pred_check_branch
      %377 = sbr.rel (%p375) target = $region64
    $region63: #{_autoencoder_jit.1} parent=5 // pred_region
      // Predicated region
      $region65: #{_autoencoder_jit.1} parent=63 // pred_check
        %p378 = pneg %p39
      $region66: #{_autoencoder_jit.1} parent=63 // pred_check_branch
        %380 = sbr.rel (%p378) target = $region68
      $region67: #{_autoencoder_jit.1} parent=63 // pred_region
        %s381 = smul.u32 7, %s19
        %p382 = scmp.lt.s32.totalorder %s381, 13
        %s383 = scalar_select %p382, %s381, 13
        %s384 = smul.addr %s383, 8
        %s385 = scalar_lea.vmem %s0, %s384
        %s386 = smul.u32 7, %s19
      $region68: #{_autoencoder_jit.1} parent=63 // pred_fallthru
        _
    $region64: #{_autoencoder_jit.1} parent=5 // pred_fallthru
      _
    %p387 = scmp.le.s32.totalorder 1, %s19
    %p388 = scmp.lt.s32.totalorder %s19, 3
    %p389 = pnand %p387, %p388
    %p390 = pneg %p389
    // Predicated region
    $region69: #{_autoencoder_jit.1} parent=5 // pred_check
      _
    $region70: #{_autoencoder_jit.1} parent=5 // pred_check_branch
      %392 = sbr.rel (%p389) target = $region72
    $region71: #{_autoencoder_jit.1} parent=5 // pred_region
      %s393 = ssub.s32 %s19, 1
      %s394 = smul.u32 7, %s24
      %p395 = scmp.lt.s32.totalorder %s394, 13
      %s396 = scalar_select %p395, %s394, 13
      %s397 = smul.addr %s396, 8
      %s398 = scalar_lea.vmem %s0, %s397
      %p399 = pneg %p45
      %p400 = pneg %p42
      %p401 = pneg %p66
      %p402 = pneg %p63
      %p403 = pneg %p87
      %p404 = pneg %p84
      %p405 = pneg %p108
      %p406 = pneg %p105
      %p407 = pneg %p129
      %p408 = pneg %p126
      %p409 = pneg %p150
      %p410 = pneg %p147
      %p411 = pneg %p171
      %p412 = pneg %p168
      %p413 = pneg %p192
      %p414 = pneg %p189
      %p415 = pneg %p213
      %p416 = pneg %p210
      %p417 = pneg %p234
      %p418 = pneg %p231
      %p419 = pneg %p255
      %p420 = pneg %p252
      %p421 = pneg %p276
      %p422 = pneg %p273
      %p423 = pneg %p297
      %p424 = pneg %p294
      %p425 = pneg %p323
      %p426 = pneg %p320
      %s427 = smul.u32 7, %s24
      %p428 = scmp.lt.s32.totalorder %s427, 13
      %s429 = scalar_select %p428, %s427, 13
      %s430 = smul.addr %s429, 8
      %s431 = scalar_lea.vmem %s13, %s430
      %s432 = smul.u32 7, %s24
      %p433 = scmp.lt.s32.totalorder %s432, 13
      %s434 = scalar_select %p433, %s432, 13
      %s435 = smul.addr %s434, 8
      %s436 = scalar_lea.vmem %s0, %s435
      %s437 = smul.u32 7, %s24
      %s438 = smul.u32 7, %s24
      %p439 = scmp.lt.s32.totalorder %s438, 13
      %s440 = scalar_select %p439, %s438, 13
      %s441 = smul.addr %s440, 8
      %s442 = scalar_lea.vmem %s13, %s441
      %s443 = smul.u32 7, %s24
      %v446 = vld [vmem:[%s436] sm:$0xff]
      %v447 = vld [vmem:[%s436 + $0x8] sm:$0xff]
      %v448 = vld [vmem:[%s436 + $0x10] sm:$0xff]
      %v449 = vld [vmem:[%s436 + $0x18] sm:$0xff]
      %v450 = vld [vmem:[%s436 + $0x20] sm:$0xff]
      %v451 = vld [vmem:[%s436 + $0x28] sm:$0xff]
      %v452 = vld [vmem:[%s436 + $0x30] sm:$0xff]
      %v453 = vpack.c.bf16 %v447, %v446
      %v454 = vpack.c.bf16 %v449, %v448
      %v455 = vpack.c.bf16 %v451, %v450
      %v456 = vpack.c.bf16 %v452, %v452
      %v457 = vld [vmem:[%s1] sm:$0xf]
      %v458 = vld [vmem:[%s1 + $0x4] sm:$0xf]
      %v459 = vld [vmem:[%s1 + $0x8] sm:$0xf]
      %v460 = vld [vmem:[%s1 + $0xc] sm:$0xf]
      %v461 = vld [vmem:[%s1 + $0x10] sm:$0xf]
      %v462 = vld [vmem:[%s1 + $0x14] sm:$0xf]
      %v463 = vld [vmem:[%s1 + $0x18] sm:$0xf]
      %v464 = vld [vmem:[%s1 + $0x1c] sm:$0xf]
      %v465 = vld [vmem:[%s1 + $0x20] sm:$0x1]
      %v466 = vld [vmem:[%s2] sm:$0x1]
      %v468 = vlaneseq
      %v469 = vshrl.u32 %v468, 7
      %v470 = vsub.s32 0, %v469
      %v471 = vrot.slane %v466, %v470
      %v482 = vunpack.c.l.b16 %v457
      %v483 = vunpack.c.l.b16 %v458
      %v484 = vunpack.c.l.b16 %v459
      %v485 = vunpack.c.l.b16 %v460
      %v486 = vunpack.c.l.b16 %v461
      %v487 = vunpack.c.l.b16 %v462
      %v488 = vunpack.c.l.b16 %v463
      %v489 = vunpack.c.l.b16 %v464
      %v490 = vunpack.c.l.b16 %v465
      %v491 = vpack.c.b16 %v483, %v482
      %v492 = vpack.c.b16 %v485, %v484
      %v493 = vpack.c.b16 %v487, %v486
      %v494 = vpack.c.b16 %v489, %v488
      %v495 = vpack.c.b16 %v490, %v490
      %vm500 = vcmask 531456
      %v502 = vsel %vm500, %v453, 0
      %v505 = vsel %vm500, %v454, 0
      %v508 = vsel %vm500, %v455, 0
      %v511 = vsel %vm500, %v456, 0
      %vm513 = vcmask 1040384
      %v514 = vsel 0, 4294967295, 65535
      %v515 = vsel %vm513, %v514, 0
      %v517 = vand.u32 %v495, %v515
      %519 = vmatprep.subr.bf16.mxu0 0
      %520 = vmatpush1.bf16.msra.mxu0 0
      %521 = vmatprep.subr.bf16.mxu0 0
      %522 = vmatpush1.bf16.msra.mxu0 0
      %523 = vmatprep.subr.bf16.mxu0 0
      %524 = vmatpush1.bf16.msra.mxu0 0
      %525 = vmatprep.subr.bf16.mxu0 0
      %526 = vmatpush1.bf16.msra.mxu0 %v517
      %527 = vmatprep.subr.bf16.mxu0 0
      %528 = vmatpush1.bf16.msra.mxu0 %v494
      %529 = vmatprep.subr.bf16.mxu0 0
      %530 = vmatpush1.bf16.msra.mxu0 %v493
      %531 = vmatprep.subr.bf16.mxu0 0
      %532 = vmatpush1.bf16.msra.mxu0 %v492
      %533 = vmatprep.subr.bf16.mxu0 0
      %534 = vmatpush1.bf16.msra.mxu0 %v491
      %535 = vmatprep.subr.bf16.mxu0 0
      %536 = vmatpush2.bf16.msra.mxu0 0
      %537 = vmatprep.subr.bf16.mxu0 0
      %538 = vmatpush2.bf16.msra.mxu0 0
      %539 = vmatprep.subr.bf16.mxu0 0
      %540 = vmatpush2.bf16.msra.mxu0 0
      %541 = vmatprep.subr.bf16.mxu0 0
      %542 = vmatpush2.bf16.msra.mxu0 0
      %543 = vmatprep.subr.bf16.mxu0 0
      %544 = vmatpush2.bf16.msra.mxu0 0
      %545 = vmatprep.subr.bf16.mxu0 0
      %546 = vmatpush2.bf16.msra.mxu0 0
      %547 = vmatprep.subr.bf16.mxu0 0
      %548 = vmatpush2.bf16.msra.mxu0 0
      %549 = vmatprep.subr.bf16.mxu0 0
      %550 = vmatpush2.bf16.msra.mxu0 0
      %551 = vmatprep.mubr.bf16.mxu0 0
      %552 = vmatmul.mubr.bf16.gmra.mxu0 %v502
      %v553 = vpop.f32.mrf.mxu0
      %v554 = vadd.f32 %v471, %v553
      %v555 = vpop.f32.mrf.mxu0
      %v556 = vpop.f32.mrf.mxu0
      %v557 = vadd.f32 %v471, %v556
      %v558 = vpop.f32.mrf.mxu0
      %559 = vmatprep.mubr.bf16.mxu0 0
      %560 = vmatmul.mubr.bf16.gmra.mxu0 %v505
      %v561 = vpop.f32.mrf.mxu0
      %v562 = vadd.f32 %v471, %v561
      %v563 = vpop.f32.mrf.mxu0
      %v564 = vpop.f32.mrf.mxu0
      %v565 = vadd.f32 %v471, %v564
      %v566 = vpop.f32.mrf.mxu0
      %567 = vmatprep.mubr.bf16.mxu0 0
      %568 = vmatmul.mubr.bf16.gmra.mxu0 %v508
      %v569 = vpop.f32.mrf.mxu0
      %v570 = vadd.f32 %v471, %v569
      %v571 = vpop.f32.mrf.mxu0
      %v572 = vpop.f32.mrf.mxu0
      %v573 = vadd.f32 %v471, %v572
      %v574 = vpop.f32.mrf.mxu0
      %575 = vmatprep.mubr.bf16.mxu0 0
      %576 = vmatmul.mubr.bf16.gmra.mxu0 %v511
      %v577 = vpop.f32.mrf.mxu0
      %v578 = vadd.f32 %v471, %v577
      %v579 = vpop.f32.mrf.mxu0
      %v580 = vpop.f32.mrf.mxu0
      %v581 = vpop.f32.mrf.mxu0
      %582 = vdwg.mxu0
      %v583 = vpack.c.bf16 %v557, %v554
      %v584 = vpack.c.bf16 %v565, %v562
      %v585 = vpack.c.bf16 %v573, %v570
      %v586 = vpack.c.bf16 %v578, %v578
      %v587 = vmul.bf16 %v583, 1009007652
      %v588 = vmul.bf16 %v584, 1009007652
      %v589 = vmul.bf16 %v585, 1009007652
      %v590 = vmul.bf16 %v586, 1009007652
      %v591 = vmax.bf16 %v583, %v587
      %v592 = vmax.bf16 %v584, %v588
      %v593 = vmax.bf16 %v585, %v589
      %v594 = vmax.bf16 %v586, %v590
      %v595 = vld [vmem:[%s3] sm:$0xf]
      %v596 = vld [vmem:[%s3 + $0x4] sm:$0xf]
      %v597 = vld [vmem:[%s3 + $0x8] sm:$0xf]
      %v598 = vld [vmem:[%s3 + $0xc] sm:$0xf]
      %v599 = vld [vmem:[%s3 + $0x10] sm:$0xf]
      %v600 = vld [vmem:[%s3 + $0x14] sm:$0xf]
      %v601 = vld [vmem:[%s3 + $0x18] sm:$0xf]
      %v602 = vld [vmem:[%s3 + $0x1c] sm:$0xf]
      %v603 = vld [vmem:[%s3 + $0x20] sm:$0xf]
      %v604 = vld [vmem:[%s3 + $0x24] sm:$0xf]
      %v605 = vld [vmem:[%s3 + $0x28] sm:$0xf]
      %v606 = vld [vmem:[%s3 + $0x2c] sm:$0xf]
      %v607 = vld [vmem:[%s3 + $0x30] sm:$0xf]
      %v608 = vld [vmem:[%s3 + $0x34] sm:$0xf]
      %v609 = vld [vmem:[%s3 + $0x38] sm:$0xf]
      %v610 = vld [vmem:[%s3 + $0x3c] sm:$0xf]
      %v611 = vld [vmem:[%s4] sm:$0x1]
      %v613 = vlaneseq
      %v614 = vshrl.u32 %v613, 7
      %v615 = vsub.s32 0, %v614
      %v616 = vrot.slane %v611, %v615
      %v634 = vunpack.c.l.b16 %v595
      %v635 = vunpack.c.l.b16 %v596
      %v636 = vunpack.c.l.b16 %v597
      %v637 = vunpack.c.l.b16 %v598
      %v638 = vunpack.c.l.b16 %v599
      %v639 = vunpack.c.l.b16 %v600
      %v640 = vunpack.c.l.b16 %v601
      %v641 = vunpack.c.l.b16 %v602
      %v642 = vunpack.c.l.b16 %v603
      %v643 = vunpack.c.l.b16 %v604
      %v644 = vunpack.c.l.b16 %v605
      %v645 = vunpack.c.l.b16 %v606
      %v646 = vunpack.c.l.b16 %v607
      %v647 = vunpack.c.l.b16 %v608
      %v648 = vunpack.c.l.b16 %v609
      %v649 = vunpack.c.l.b16 %v610
      %v650 = vpack.c.b16 %v635, %v634
      %v651 = vpack.c.b16 %v637, %v636
      %v652 = vpack.c.b16 %v639, %v638
      %v653 = vpack.c.b16 %v641, %v640
      %v654 = vpack.c.b16 %v643, %v642
      %v655 = vpack.c.b16 %v645, %v644
      %v656 = vpack.c.b16 %v647, %v646
      %v657 = vpack.c.b16 %v649, %v648
      %666 = vmatprep.subr.bf16.mxu0 0
      %667 = vmatpush1.bf16.msra.mxu0 %v657
      %668 = vmatprep.subr.bf16.mxu0 0
      %669 = vmatpush1.bf16.msra.mxu0 %v656
      %670 = vmatprep.subr.bf16.mxu0 0
      %671 = vmatpush1.bf16.msra.mxu0 %v655
      %672 = vmatprep.subr.bf16.mxu0 0
      %673 = vmatpush1.bf16.msra.mxu0 %v654
      %674 = vmatprep.subr.bf16.mxu0 0
      %675 = vmatpush1.bf16.msra.mxu0 %v653
      %676 = vmatprep.subr.bf16.mxu0 0
      %677 = vmatpush1.bf16.msra.mxu0 %v652
      %678 = vmatprep.subr.bf16.mxu0 0
      %679 = vmatpush1.bf16.msra.mxu0 %v651
      %680 = vmatprep.subr.bf16.mxu0 0
      %681 = vmatpush1.bf16.msra.mxu0 %v650
      %682 = vmatprep.subr.bf16.mxu0 0
      %683 = vmatpush2.bf16.msra.mxu0 0
      %684 = vmatprep.subr.bf16.mxu0 0
      %685 = vmatpush2.bf16.msra.mxu0 0
      %686 = vmatprep.subr.bf16.mxu0 0
      %687 = vmatpush2.bf16.msra.mxu0 0
      %688 = vmatprep.subr.bf16.mxu0 0
      %689 = vmatpush2.bf16.msra.mxu0 0
      %690 = vmatprep.subr.bf16.mxu0 0
      %691 = vmatpush2.bf16.msra.mxu0 0
      %692 = vmatprep.subr.bf16.mxu0 0
      %693 = vmatpush2.bf16.msra.mxu0 0
      %694 = vmatprep.subr.bf16.mxu0 0
      %695 = vmatpush2.bf16.msra.mxu0 0
      %696 = vmatprep.subr.bf16.mxu0 0
      %697 = vmatpush2.bf16.msra.mxu0 0
      %698 = vmatprep.mubr.bf16.mxu0 0
      %699 = vmatmul.mubr.bf16.gmra.mxu0 %v591
      %v700 = vpop.f32.mrf.mxu0
      %v701 = vadd.f32 %v616, %v700
      %v702 = vpop.f32.mrf.mxu0
      %v703 = vpop.f32.mrf.mxu0
      %v704 = vadd.f32 %v616, %v703
      %v705 = vpop.f32.mrf.mxu0
      %706 = vmatprep.mubr.bf16.mxu0 0
      %707 = vmatmul.mubr.bf16.gmra.mxu0 %v592
      %v708 = vpop.f32.mrf.mxu0
      %v709 = vadd.f32 %v616, %v708
      %v710 = vpop.f32.mrf.mxu0
      %v711 = vpop.f32.mrf.mxu0
      %v712 = vadd.f32 %v616, %v711
      %v713 = vpop.f32.mrf.mxu0
      %714 = vmatprep.mubr.bf16.mxu0 0
      %715 = vmatmul.mubr.bf16.gmra.mxu0 %v593
      %v716 = vpop.f32.mrf.mxu0
      %v717 = vadd.f32 %v616, %v716
      %v718 = vpop.f32.mrf.mxu0
      %v719 = vpop.f32.mrf.mxu0
      %v720 = vadd.f32 %v616, %v719
      %v721 = vpop.f32.mrf.mxu0
      %722 = vmatprep.mubr.bf16.mxu0 0
      %723 = vmatmul.mubr.bf16.gmra.mxu0 %v594
      %v724 = vpop.f32.mrf.mxu0
      %v725 = vadd.f32 %v616, %v724
      %v726 = vpop.f32.mrf.mxu0
      %v727 = vpop.f32.mrf.mxu0
      %v728 = vpop.f32.mrf.mxu0
      %729 = vdwg.mxu0
      %v730 = vpack.c.bf16 %v704, %v701
      %v731 = vpack.c.bf16 %v712, %v709
      %v732 = vpack.c.bf16 %v720, %v717
      %v733 = vpack.c.bf16 %v725, %v725
      %v734 = vmul.bf16 %v730, 1009007652
      %v735 = vmul.bf16 %v731, 1009007652
      %v736 = vmul.bf16 %v732, 1009007652
      %v737 = vmul.bf16 %v733, 1009007652
      %v738 = vmax.bf16 %v730, %v734
      %v739 = vmax.bf16 %v731, %v735
      %v740 = vmax.bf16 %v732, %v736
      %v741 = vmax.bf16 %v733, %v737
      %v742 = vld [vmem:[%s5] sm:$0xf]
      %v743 = vld [vmem:[%s5 + $0x4] sm:$0xf]
      %v744 = vld [vmem:[%s5 + $0x8] sm:$0xf]
      %v745 = vld [vmem:[%s5 + $0xc] sm:$0xf]
      %v746 = vld [vmem:[%s5 + $0x10] sm:$0xf]
      %v747 = vld [vmem:[%s5 + $0x14] sm:$0xf]
      %v748 = vld [vmem:[%s5 + $0x18] sm:$0xf]
      %v749 = vld [vmem:[%s5 + $0x1c] sm:$0xf]
      %v750 = vld [vmem:[%s5 + $0x20] sm:$0xf]
      %v751 = vld [vmem:[%s5 + $0x24] sm:$0xf]
      %v752 = vld [vmem:[%s5 + $0x28] sm:$0xf]
      %v753 = vld [vmem:[%s5 + $0x2c] sm:$0xf]
      %v754 = vld [vmem:[%s5 + $0x30] sm:$0xf]
      %v755 = vld [vmem:[%s5 + $0x34] sm:$0xf]
      %v756 = vld [vmem:[%s5 + $0x38] sm:$0xf]
      %v757 = vld [vmem:[%s5 + $0x3c] sm:$0xf]
      %v758 = vld [vmem:[%s6] sm:$0x1]
      %v760 = vlaneseq
      %v761 = vshrl.u32 %v760, 7
      %v762 = vsub.s32 0, %v761
      %v763 = vrot.slane %v758, %v762
      %v781 = vunpack.c.l.b16 %v742
      %v782 = vunpack.c.l.b16 %v743
      %v783 = vunpack.c.l.b16 %v744
      %v784 = vunpack.c.l.b16 %v745
      %v785 = vunpack.c.l.b16 %v746
      %v786 = vunpack.c.l.b16 %v747
      %v787 = vunpack.c.l.b16 %v748
      %v788 = vunpack.c.l.b16 %v749
      %v789 = vunpack.c.l.b16 %v750
      %v790 = vunpack.c.l.b16 %v751
      %v791 = vunpack.c.l.b16 %v752
      %v792 = vunpack.c.l.b16 %v753
      %v793 = vunpack.c.l.b16 %v754
      %v794 = vunpack.c.l.b16 %v755
      %v795 = vunpack.c.l.b16 %v756
      %v796 = vunpack.c.l.b16 %v757
      %v797 = vpack.c.b16 %v782, %v781
      %v798 = vpack.c.b16 %v784, %v783
      %v799 = vpack.c.b16 %v786, %v785
      %v800 = vpack.c.b16 %v788, %v787
      %v801 = vpack.c.b16 %v790, %v789
      %v802 = vpack.c.b16 %v792, %v791
      %v803 = vpack.c.b16 %v794, %v793
      %v804 = vpack.c.b16 %v796, %v795
      %813 = vmatprep.subr.bf16.mxu0 0
      %814 = vmatpush1.bf16.msra.mxu0 %v804
      %815 = vmatprep.subr.bf16.mxu0 0
      %816 = vmatpush1.bf16.msra.mxu0 %v803
      %817 = vmatprep.subr.bf16.mxu0 0
      %818 = vmatpush1.bf16.msra.mxu0 %v802
      %819 = vmatprep.subr.bf16.mxu0 0
      %820 = vmatpush1.bf16.msra.mxu0 %v801
      %821 = vmatprep.subr.bf16.mxu0 0
      %822 = vmatpush1.bf16.msra.mxu0 %v800
      %823 = vmatprep.subr.bf16.mxu0 0
      %824 = vmatpush1.bf16.msra.mxu0 %v799
      %825 = vmatprep.subr.bf16.mxu0 0
      %826 = vmatpush1.bf16.msra.mxu0 %v798
      %827 = vmatprep.subr.bf16.mxu0 0
      %828 = vmatpush1.bf16.msra.mxu0 %v797
      %829 = vmatprep.subr.bf16.mxu0 0
      %830 = vmatpush2.bf16.msra.mxu0 0
      %831 = vmatprep.subr.bf16.mxu0 0
      %832 = vmatpush2.bf16.msra.mxu0 0
      %833 = vmatprep.subr.bf16.mxu0 0
      %834 = vmatpush2.bf16.msra.mxu0 0
      %835 = vmatprep.subr.bf16.mxu0 0
      %836 = vmatpush2.bf16.msra.mxu0 0
      %837 = vmatprep.subr.bf16.mxu0 0
      %838 = vmatpush2.bf16.msra.mxu0 0
      %839 = vmatprep.subr.bf16.mxu0 0
      %840 = vmatpush2.bf16.msra.mxu0 0
      %841 = vmatprep.subr.bf16.mxu0 0
      %842 = vmatpush2.bf16.msra.mxu0 0
      %843 = vmatprep.subr.bf16.mxu0 0
      %844 = vmatpush2.bf16.msra.mxu0 0
      %845 = vmatprep.mubr.bf16.mxu0 0
      %846 = vmatmul.mubr.bf16.gmra.mxu0 %v738
      %v847 = vpop.f32.mrf.mxu0
      %v848 = vadd.f32 %v763, %v847
      %v849 = vpop.f32.mrf.mxu0
      %v850 = vpop.f32.mrf.mxu0
      %v851 = vadd.f32 %v763, %v850
      %v852 = vpop.f32.mrf.mxu0
      %853 = vmatprep.mubr.bf16.mxu0 0
      %854 = vmatmul.mubr.bf16.gmra.mxu0 %v739
      %v855 = vpop.f32.mrf.mxu0
      %v856 = vadd.f32 %v763, %v855
      %v857 = vpop.f32.mrf.mxu0
      %v858 = vpop.f32.mrf.mxu0
      %v859 = vadd.f32 %v763, %v858
      %v860 = vpop.f32.mrf.mxu0
      %861 = vmatprep.mubr.bf16.mxu0 0
      %862 = vmatmul.mubr.bf16.gmra.mxu0 %v740
      %v863 = vpop.f32.mrf.mxu0
      %v864 = vadd.f32 %v763, %v863
      %v865 = vpop.f32.mrf.mxu0
      %v866 = vpop.f32.mrf.mxu0
      %v867 = vadd.f32 %v763, %v866
      %v868 = vpop.f32.mrf.mxu0
      %869 = vmatprep.mubr.bf16.mxu0 0
      %870 = vmatmul.mubr.bf16.gmra.mxu0 %v741
      %v871 = vpop.f32.mrf.mxu0
      %v872 = vadd.f32 %v763, %v871
      %v873 = vpop.f32.mrf.mxu0
      %v874 = vpop.f32.mrf.mxu0
      %v875 = vpop.f32.mrf.mxu0
      %876 = vdwg.mxu0
      %v877 = vpack.c.bf16 %v851, %v848
      %v878 = vpack.c.bf16 %v859, %v856
      %v879 = vpack.c.bf16 %v867, %v864
      %v880 = vpack.c.bf16 %v872, %v872
      %v881 = vmul.bf16 %v877, 1009007652
      %v882 = vmul.bf16 %v878, 1009007652
      %v883 = vmul.bf16 %v879, 1009007652
      %v884 = vmul.bf16 %v880, 1009007652
      %v885 = vmax.bf16 %v877, %v881
      %v886 = vmax.bf16 %v878, %v882
      %v887 = vmax.bf16 %v879, %v883
      %v888 = vmax.bf16 %v880, %v884
      %v889 = vld [vmem:[%s7] sm:$0xf]
      %v890 = vld [vmem:[%s7 + $0x4] sm:$0xf]
      %v891 = vld [vmem:[%s7 + $0x8] sm:$0xf]
      %v892 = vld [vmem:[%s7 + $0xc] sm:$0xf]
      %v893 = vld [vmem:[%s7 + $0x10] sm:$0xf]
      %v894 = vld [vmem:[%s7 + $0x14] sm:$0xf]
      %v895 = vld [vmem:[%s7 + $0x18] sm:$0xf]
      %v896 = vld [vmem:[%s7 + $0x1c] sm:$0xf]
      %v897 = vld [vmem:[%s7 + $0x20] sm:$0xf]
      %v898 = vld [vmem:[%s7 + $0x24] sm:$0xf]
      %v899 = vld [vmem:[%s7 + $0x28] sm:$0xf]
      %v900 = vld [vmem:[%s7 + $0x2c] sm:$0xf]
      %v901 = vld [vmem:[%s7 + $0x30] sm:$0xf]
      %v902 = vld [vmem:[%s7 + $0x34] sm:$0xf]
      %v903 = vld [vmem:[%s7 + $0x38] sm:$0xf]
      %v904 = vld [vmem:[%s7 + $0x3c] sm:$0xf]
      %v905 = vld [vmem:[%s8] sm:$0x1]
      %v907 = vlaneseq
      %v908 = vshrl.u32 %v907, 7
      %v909 = vsub.s32 0, %v908
      %v910 = vrot.slane %v905, %v909
      %v928 = vunpack.c.l.b16 %v889
      %v929 = vunpack.c.l.b16 %v890
      %v930 = vunpack.c.l.b16 %v891
      %v931 = vunpack.c.l.b16 %v892
      %v932 = vunpack.c.l.b16 %v893
      %v933 = vunpack.c.l.b16 %v894
      %v934 = vunpack.c.l.b16 %v895
      %v935 = vunpack.c.l.b16 %v896
      %v936 = vunpack.c.l.b16 %v897
      %v937 = vunpack.c.l.b16 %v898
      %v938 = vunpack.c.l.b16 %v899
      %v939 = vunpack.c.l.b16 %v900
      %v940 = vunpack.c.l.b16 %v901
      %v941 = vunpack.c.l.b16 %v902
      %v942 = vunpack.c.l.b16 %v903
      %v943 = vunpack.c.l.b16 %v904
      %v944 = vpack.c.b16 %v929, %v928
      %v945 = vpack.c.b16 %v931, %v930
      %v946 = vpack.c.b16 %v933, %v932
      %v947 = vpack.c.b16 %v935, %v934
      %v948 = vpack.c.b16 %v937, %v936
      %v949 = vpack.c.b16 %v939, %v938
      %v950 = vpack.c.b16 %v941, %v940
      %v951 = vpack.c.b16 %v943, %v942
      %960 = vmatprep.subr.bf16.mxu0 0
      %961 = vmatpush1.bf16.msra.mxu0 %v951
      %962 = vmatprep.subr.bf16.mxu0 0
      %963 = vmatpush1.bf16.msra.mxu0 %v950
      %964 = vmatprep.subr.bf16.mxu0 0
      %965 = vmatpush1.bf16.msra.mxu0 %v949
      %966 = vmatprep.subr.bf16.mxu0 0
      %967 = vmatpush1.bf16.msra.mxu0 %v948
      %968 = vmatprep.subr.bf16.mxu0 0
      %969 = vmatpush1.bf16.msra.mxu0 %v947
      %970 = vmatprep.subr.bf16.mxu0 0
      %971 = vmatpush1.bf16.msra.mxu0 %v946
      %972 = vmatprep.subr.bf16.mxu0 0
      %973 = vmatpush1.bf16.msra.mxu0 %v945
      %974 = vmatprep.subr.bf16.mxu0 0
      %975 = vmatpush1.bf16.msra.mxu0 %v944
      %976 = vmatprep.subr.bf16.mxu0 0
      %977 = vmatpush2.bf16.msra.mxu0 0
      %978 = vmatprep.subr.bf16.mxu0 0
      %979 = vmatpush2.bf16.msra.mxu0 0
      %980 = vmatprep.subr.bf16.mxu0 0
      %981 = vmatpush2.bf16.msra.mxu0 0
      %982 = vmatprep.subr.bf16.mxu0 0
      %983 = vmatpush2.bf16.msra.mxu0 0
      %984 = vmatprep.subr.bf16.mxu0 0
      %985 = vmatpush2.bf16.msra.mxu0 0
      %986 = vmatprep.subr.bf16.mxu0 0
      %987 = vmatpush2.bf16.msra.mxu0 0
      %988 = vmatprep.subr.bf16.mxu0 0
      %989 = vmatpush2.bf16.msra.mxu0 0
      %990 = vmatprep.subr.bf16.mxu0 0
      %991 = vmatpush2.bf16.msra.mxu0 0
      %992 = vmatprep.mubr.bf16.mxu0 0
      %993 = vmatmul.mubr.bf16.gmra.mxu0 %v885
      %v994 = vpop.f32.mrf.mxu0
      %v995 = vadd.f32 %v910, %v994
      %v996 = vpop.f32.mrf.mxu0
      %v997 = vpop.f32.mrf.mxu0
      %v998 = vadd.f32 %v910, %v997
      %v999 = vpop.f32.mrf.mxu0
      %1000 = vmatprep.mubr.bf16.mxu0 0
      %1001 = vmatmul.mubr.bf16.gmra.mxu0 %v886
      %v1002 = vpop.f32.mrf.mxu0
      %v1003 = vadd.f32 %v910, %v1002
      %v1004 = vpop.f32.mrf.mxu0
      %v1005 = vpop.f32.mrf.mxu0
      %v1006 = vadd.f32 %v910, %v1005
      %v1007 = vpop.f32.mrf.mxu0
      %1008 = vmatprep.mubr.bf16.mxu0 0
      %1009 = vmatmul.mubr.bf16.gmra.mxu0 %v887
      %v1010 = vpop.f32.mrf.mxu0
      %v1011 = vadd.f32 %v910, %v1010
      %v1012 = vpop.f32.mrf.mxu0
      %v1013 = vpop.f32.mrf.mxu0
      %v1014 = vadd.f32 %v910, %v1013
      %v1015 = vpop.f32.mrf.mxu0
      %1016 = vmatprep.mubr.bf16.mxu0 0
      %1017 = vmatmul.mubr.bf16.gmra.mxu0 %v888
      %v1018 = vpop.f32.mrf.mxu0
      %v1019 = vadd.f32 %v910, %v1018
      %v1020 = vpop.f32.mrf.mxu0
      %v1021 = vpop.f32.mrf.mxu0
      %v1022 = vpop.f32.mrf.mxu0
      %1023 = vdwg.mxu0
      %v1024 = vpack.c.bf16 %v998, %v995
      %v1025 = vpack.c.bf16 %v1006, %v1003
      %v1026 = vpack.c.bf16 %v1014, %v1011
      %v1027 = vpack.c.bf16 %v1019, %v1019
      %v1028 = vmul.bf16 %v1024, 1009007652
      %v1029 = vmul.bf16 %v1025, 1009007652
      %v1030 = vmul.bf16 %v1026, 1009007652
      %v1031 = vmul.bf16 %v1027, 1009007652
      %v1032 = vmax.bf16 %v1024, %v1028
      %v1033 = vmax.bf16 %v1025, %v1029
      %v1034 = vmax.bf16 %v1026, %v1030
      %v1035 = vmax.bf16 %v1027, %v1031
      %v1036 = vld [vmem:[%s9] sm:$0xf]
      %v1037 = vld [vmem:[%s9 + $0x4] sm:$0xf]
      %v1038 = vld [vmem:[%s9 + $0x8] sm:$0xf]
      %v1039 = vld [vmem:[%s9 + $0xc] sm:$0xf]
      %v1040 = vld [vmem:[%s9 + $0x10] sm:$0xf]
      %v1041 = vld [vmem:[%s9 + $0x14] sm:$0xf]
      %v1042 = vld [vmem:[%s9 + $0x18] sm:$0xf]
      %v1043 = vld [vmem:[%s9 + $0x1c] sm:$0xf]
      %v1044 = vld [vmem:[%s9 + $0x20] sm:$0xf]
      %v1045 = vld [vmem:[%s9 + $0x24] sm:$0xf]
      %v1046 = vld [vmem:[%s9 + $0x28] sm:$0xf]
      %v1047 = vld [vmem:[%s9 + $0x2c] sm:$0xf]
      %v1048 = vld [vmem:[%s9 + $0x30] sm:$0xf]
      %v1049 = vld [vmem:[%s9 + $0x34] sm:$0xf]
      %v1050 = vld [vmem:[%s9 + $0x38] sm:$0xf]
      %v1051 = vld [vmem:[%s9 + $0x3c] sm:$0xf]
      %v1052 = vld [vmem:[%s10] sm:$0x1]
      %v1054 = vlaneseq
      %v1055 = vshrl.u32 %v1054, 7
      %v1056 = vsub.s32 0, %v1055
      %v1057 = vrot.slane %v1052, %v1056
      %v1075 = vunpack.c.l.b16 %v1036
      %v1076 = vunpack.c.l.b16 %v1037
      %v1077 = vunpack.c.l.b16 %v1038
      %v1078 = vunpack.c.l.b16 %v1039
      %v1079 = vunpack.c.l.b16 %v1040
      %v1080 = vunpack.c.l.b16 %v1041
      %v1081 = vunpack.c.l.b16 %v1042
      %v1082 = vunpack.c.l.b16 %v1043
      %v1083 = vunpack.c.l.b16 %v1044
      %v1084 = vunpack.c.l.b16 %v1045
      %v1085 = vunpack.c.l.b16 %v1046
      %v1086 = vunpack.c.l.b16 %v1047
      %v1087 = vunpack.c.l.b16 %v1048
      %v1088 = vunpack.c.l.b16 %v1049
      %v1089 = vunpack.c.l.b16 %v1050
      %v1090 = vunpack.c.l.b16 %v1051
      %v1091 = vpack.c.b16 %v1076, %v1075
      %v1092 = vpack.c.b16 %v1078, %v1077
      %v1093 = vpack.c.b16 %v1080, %v1079
      %v1094 = vpack.c.b16 %v1082, %v1081
      %v1095 = vpack.c.b16 %v1084, %v1083
      %v1096 = vpack.c.b16 %v1086, %v1085
      %v1097 = vpack.c.b16 %v1088, %v1087
      %v1098 = vpack.c.b16 %v1090, %v1089
      %1107 = vmatprep.subr.bf16.mxu0 0
      %1108 = vmatpush1.bf16.msra.mxu0 %v1098
      %1109 = vmatprep.subr.bf16.mxu0 0
      %1110 = vmatpush1.bf16.msra.mxu0 %v1097
      %1111 = vmatprep.subr.bf16.mxu0 0
      %1112 = vmatpush1.bf16.msra.mxu0 %v1096
      %1113 = vmatprep.subr.bf16.mxu0 0
      %1114 = vmatpush1.bf16.msra.mxu0 %v1095
      %1115 = vmatprep.subr.bf16.mxu0 0
      %1116 = vmatpush1.bf16.msra.mxu0 %v1094
      %1117 = vmatprep.subr.bf16.mxu0 0
      %1118 = vmatpush1.bf16.msra.mxu0 %v1093
      %1119 = vmatprep.subr.bf16.mxu0 0
      %1120 = vmatpush1.bf16.msra.mxu0 %v1092
      %1121 = vmatprep.subr.bf16.mxu0 0
      %1122 = vmatpush1.bf16.msra.mxu0 %v1091
      %1123 = vmatprep.subr.bf16.mxu0 0
      %1124 = vmatpush2.bf16.msra.mxu0 0
      %1125 = vmatprep.subr.bf16.mxu0 0
      %1126 = vmatpush2.bf16.msra.mxu0 0
      %1127 = vmatprep.subr.bf16.mxu0 0
      %1128 = vmatpush2.bf16.msra.mxu0 0
      %1129 = vmatprep.subr.bf16.mxu0 0
      %1130 = vmatpush2.bf16.msra.mxu0 0
      %1131 = vmatprep.subr.bf16.mxu0 0
      %1132 = vmatpush2.bf16.msra.mxu0 0
      %1133 = vmatprep.subr.bf16.mxu0 0
      %1134 = vmatpush2.bf16.msra.mxu0 0
      %1135 = vmatprep.subr.bf16.mxu0 0
      %1136 = vmatpush2.bf16.msra.mxu0 0
      %1137 = vmatprep.subr.bf16.mxu0 0
      %1138 = vmatpush2.bf16.msra.mxu0 0
      %1139 = vmatprep.mubr.bf16.mxu0 0
      %1140 = vmatmul.mubr.bf16.gmra.mxu0 %v1032
      %v1141 = vpop.f32.mrf.mxu0
      %v1142 = vadd.f32 %v1057, %v1141
      %v1143 = vpop.f32.mrf.mxu0
      %v1144 = vpop.f32.mrf.mxu0
      %v1145 = vadd.f32 %v1057, %v1144
      %v1146 = vpop.f32.mrf.mxu0
      %1147 = vmatprep.mubr.bf16.mxu0 0
      %1148 = vmatmul.mubr.bf16.gmra.mxu0 %v1033
      %v1149 = vpop.f32.mrf.mxu0
      %v1150 = vadd.f32 %v1057, %v1149
      %v1151 = vpop.f32.mrf.mxu0
      %v1152 = vpop.f32.mrf.mxu0
      %v1153 = vadd.f32 %v1057, %v1152
      %v1154 = vpop.f32.mrf.mxu0
      %1155 = vmatprep.mubr.bf16.mxu0 0
      %1156 = vmatmul.mubr.bf16.gmra.mxu0 %v1034
      %v1157 = vpop.f32.mrf.mxu0
      %v1158 = vadd.f32 %v1057, %v1157
      %v1159 = vpop.f32.mrf.mxu0
      %v1160 = vpop.f32.mrf.mxu0
      %v1161 = vadd.f32 %v1057, %v1160
      %v1162 = vpop.f32.mrf.mxu0
      %1163 = vmatprep.mubr.bf16.mxu0 0
      %1164 = vmatmul.mubr.bf16.gmra.mxu0 %v1035
      %v1165 = vpop.f32.mrf.mxu0
      %v1166 = vadd.f32 %v1057, %v1165
      %v1167 = vpop.f32.mrf.mxu0
      %v1168 = vpop.f32.mrf.mxu0
      %v1169 = vpop.f32.mrf.mxu0
      %1170 = vdwg.mxu0
      %v1171 = vpack.c.bf16 %v1145, %v1142
      %v1172 = vpack.c.bf16 %v1153, %v1150
      %v1173 = vpack.c.bf16 %v1161, %v1158
      %v1174 = vpack.c.bf16 %v1166, %v1166
      %v1175 = vmul.bf16 %v1171, 1009007652
      %v1176 = vmul.bf16 %v1172, 1009007652
      %v1177 = vmul.bf16 %v1173, 1009007652
      %v1178 = vmul.bf16 %v1174, 1009007652
      %v1179 = vmax.bf16 %v1171, %v1175
      %v1180 = vmax.bf16 %v1172, %v1176
      %v1181 = vmax.bf16 %v1173, %v1177
      %v1182 = vmax.bf16 %v1174, %v1178
      %v1183 = vld [vmem:[%s11] sm:$0xf]
      %v1184 = vld [vmem:[%s11 + $0x4] sm:$0xf]
      %v1185 = vld [vmem:[%s11 + $0x8] sm:$0xf]
      %v1186 = vld [vmem:[%s11 + $0xc] sm:$0xf]
      %v1187 = vld [vmem:[%s11 + $0x10] sm:$0xf]
      %v1188 = vld [vmem:[%s11 + $0x14] sm:$0xf]
      %v1189 = vld [vmem:[%s11 + $0x18] sm:$0xf]
      %v1190 = vld [vmem:[%s11 + $0x1c] sm:$0xf]
      %v1191 = vld [vmem:[%s11 + $0x20] sm:$0xf]
      %v1192 = vld [vmem:[%s11 + $0x24] sm:$0xf]
      %v1193 = vld [vmem:[%s11 + $0x28] sm:$0xf]
      %v1194 = vld [vmem:[%s11 + $0x2c] sm:$0xf]
      %v1195 = vld [vmem:[%s11 + $0x30] sm:$0xf]
      %v1196 = vld [vmem:[%s11 + $0x34] sm:$0xf]
      %v1197 = vld [vmem:[%s11 + $0x38] sm:$0xf]
      %v1198 = vld [vmem:[%s11 + $0x3c] sm:$0xf]
      %v1199 = vld [vmem:[%s12] sm:$0x1]
      %v1201 = vlaneseq
      %v1202 = vshrl.u32 %v1201, 7
      %v1203 = vsub.s32 0, %v1202
      %v1204 = vrot.slane %v1199, %v1203
      %v1222 = vunpack.c.l.b16 %v1183
      %v1223 = vunpack.c.l.b16 %v1184
      %v1224 = vunpack.c.l.b16 %v1185
      %v1225 = vunpack.c.l.b16 %v1186
      %v1226 = vunpack.c.l.b16 %v1187
      %v1227 = vunpack.c.l.b16 %v1188
      %v1228 = vunpack.c.l.b16 %v1189
      %v1229 = vunpack.c.l.b16 %v1190
      %v1230 = vunpack.c.l.b16 %v1191
      %v1231 = vunpack.c.l.b16 %v1192
      %v1232 = vunpack.c.l.b16 %v1193
      %v1233 = vunpack.c.l.b16 %v1194
      %v1234 = vunpack.c.l.b16 %v1195
      %v1235 = vunpack.c.l.b16 %v1196
      %v1236 = vunpack.c.l.b16 %v1197
      %v1237 = vunpack.c.l.b16 %v1198
      %v1238 = vpack.c.b16 %v1223, %v1222
      %v1239 = vpack.c.b16 %v1225, %v1224
      %v1240 = vpack.c.b16 %v1227, %v1226
      %v1241 = vpack.c.b16 %v1229, %v1228
      %v1242 = vpack.c.b16 %v1231, %v1230
      %v1243 = vpack.c.b16 %v1233, %v1232
      %v1244 = vpack.c.b16 %v1235, %v1234
      %v1245 = vpack.c.b16 %v1237, %v1236
      %1254 = vmatprep.subr.bf16.mxu0 0
      %1255 = vmatpush1.bf16.msra.mxu0 %v1245
      %1256 = vmatprep.subr.bf16.mxu0 0
      %1257 = vmatpush1.bf16.msra.mxu0 %v1244
      %1258 = vmatprep.subr.bf16.mxu0 0
      %1259 = vmatpush1.bf16.msra.mxu0 %v1243
      %1260 = vmatprep.subr.bf16.mxu0 0
      %1261 = vmatpush1.bf16.msra.mxu0 %v1242
      %1262 = vmatprep.subr.bf16.mxu0 0
      %1263 = vmatpush1.bf16.msra.mxu0 %v1241
      %1264 = vmatprep.subr.bf16.mxu0 0
      %1265 = vmatpush1.bf16.msra.mxu0 %v1240
      %1266 = vmatprep.subr.bf16.mxu0 0
      %1267 = vmatpush1.bf16.msra.mxu0 %v1239
      %1268 = vmatprep.subr.bf16.mxu0 0
      %1269 = vmatpush1.bf16.msra.mxu0 %v1238
      %1270 = vmatprep.subr.bf16.mxu0 0
      %1271 = vmatpush2.bf16.msra.mxu0 0
      %1272 = vmatprep.subr.bf16.mxu0 0
      %1273 = vmatpush2.bf16.msra.mxu0 0
      %1274 = vmatprep.subr.bf16.mxu0 0
      %1275 = vmatpush2.bf16.msra.mxu0 0
      %1276 = vmatprep.subr.bf16.mxu0 0
      %1277 = vmatpush2.bf16.msra.mxu0 0
      %1278 = vmatprep.subr.bf16.mxu0 0
      %1279 = vmatpush2.bf16.msra.mxu0 0
      %1280 = vmatprep.subr.bf16.mxu0 0
      %1281 = vmatpush2.bf16.msra.mxu0 0
      %1282 = vmatprep.subr.bf16.mxu0 0
      %1283 = vmatpush2.bf16.msra.mxu0 0
      %1284 = vmatprep.subr.bf16.mxu0 0
      %1285 = vmatpush2.bf16.msra.mxu0 0
      %1286 = vmatprep.mubr.bf16.mxu0 0
      %1287 = vmatmul.mubr.bf16.gmra.mxu0 %v1179
      %v1288 = vpop.f32.mrf.mxu0
      %v1289 = vadd.f32 %v1204, %v1288
      %v1290 = vpop.f32.mrf.mxu0
      %v1291 = vpop.f32.mrf.mxu0
      %v1292 = vadd.f32 %v1204, %v1291
      %v1293 = vpop.f32.mrf.mxu0
      %1294 = vmatprep.mubr.bf16.mxu0 0
      %1295 = vmatmul.mubr.bf16.gmra.mxu0 %v1180
      %v1296 = vpop.f32.mrf.mxu0
      %v1297 = vadd.f32 %v1204, %v1296
      %v1298 = vpop.f32.mrf.mxu0
      %v1299 = vpop.f32.mrf.mxu0
      %v1300 = vadd.f32 %v1204, %v1299
      %v1301 = vpop.f32.mrf.mxu0
      %1302 = vmatprep.mubr.bf16.mxu0 0
      %1303 = vmatmul.mubr.bf16.gmra.mxu0 %v1181
      %v1304 = vpop.f32.mrf.mxu0
      %v1305 = vadd.f32 %v1204, %v1304
      %v1306 = vpop.f32.mrf.mxu0
      %v1307 = vpop.f32.mrf.mxu0
      %v1308 = vadd.f32 %v1204, %v1307
      %v1309 = vpop.f32.mrf.mxu0
      %1310 = vmatprep.mubr.bf16.mxu0 0
      %1311 = vmatmul.mubr.bf16.gmra.mxu0 %v1182
      %v1312 = vpop.f32.mrf.mxu0
      %v1313 = vadd.f32 %v1204, %v1312
      %v1314 = vpop.f32.mrf.mxu0
      %v1315 = vpop.f32.mrf.mxu0
      %v1316 = vpop.f32.mrf.mxu0
      %1317 = vdwg.mxu0
      %v1318 = vmul.f32 %v1289, 0.01
      %v1319 = vmul.f32 %v1292, 0.01
      %v1320 = vmul.f32 %v1297, 0.01
      %v1321 = vmul.f32 %v1300, 0.01
      %v1322 = vmul.f32 %v1305, 0.01
      %v1323 = vmul.f32 %v1308, 0.01
      %v1324 = vmul.f32 %v1313, 0.01
      %v1325 = vmax.f32 %v1289, %v1318
      %v1326 = vmax.f32 %v1292, %v1319
      %v1327 = vmax.f32 %v1297, %v1320
      %v1328 = vmax.f32 %v1300, %v1321
      %v1329 = vmax.f32 %v1305, %v1322
      %v1330 = vmax.f32 %v1308, %v1323
      %v1331 = vmax.f32 %v1313, %v1324
      %1332 = vst.msk [vmem:[%s442] sm:$0xff] %vm500, %v1325
      %1333 = vst.msk [vmem:[%s442 + $0x8] sm:$0xff] %vm500, %v1326
      %1334 = vst.msk [vmem:[%s442 + $0x10] sm:$0xff] %vm500, %v1327
      %1335 = vst.msk [vmem:[%s442 + $0x18] sm:$0xff] %vm500, %v1328
      %1336 = vst.msk [vmem:[%s442 + $0x20] sm:$0xff] %vm500, %v1329
      %1337 = vst.msk [vmem:[%s442 + $0x28] sm:$0xff] %vm500, %v1330
      %1338 = vst.msk [vmem:[%s442 + $0x30] sm:$0xff] %vm500, %v1331
      %s1339 = smul.u32 7, %s24
      %p1340 = scmp.lt.s32.totalorder %s1339, 13
      %s1341 = scalar_select %p1340, %s1339, 13
      %s1342 = smul.addr %s1341, 8
      %s1343 = scalar_lea.vmem %s13, %s1342
      // Predicated region
      $region73: #{_autoencoder_jit.1} parent=71 // pred_check
        %p1344 = pneg %p320
      $region74: #{_autoencoder_jit.1} parent=71 // pred_check_branch
        %1346 = sbr.rel (%p1344) target = $region76
      $region75: #{_autoencoder_jit.1} parent=71 // pred_region
        %s1347 = smul.u32 7, %s24
      $region76: #{_autoencoder_jit.1} parent=71 // pred_fallthru
        _
    $region72: #{_autoencoder_jit.1} parent=5 // pred_fallthru
      _
    %p1348 = scmp.le.s32.totalorder 2, %s19
    // Predicated region
    $region77: #{_autoencoder_jit.1} parent=5 // pred_check
      %p1349 = pneg %p1348
    $region78: #{_autoencoder_jit.1} parent=5 // pred_check_branch
      %1351 = sbr.rel (%p1349) target = $region80
    $region79: #{_autoencoder_jit.1} parent=5 // pred_region
      %s1352 = ssub.s32 %s19, 2
      // Predicated region
      $region81: #{_autoencoder_jit.1} parent=79 // pred_check
        %p1353 = pneg %p326
      $region82: #{_autoencoder_jit.1} parent=79 // pred_check_branch
        %1355 = sbr.rel (%p1353) target = $region84
      $region83: #{_autoencoder_jit.1} parent=79 // pred_region
        %s1356 = smul.u32 7, %s25
        %p1357 = scmp.lt.s32.totalorder %s1356, 13
        %s1358 = scalar_select %p1357, %s1356, 13
        %s1359 = smul.addr %s1358, 8
        %s1360 = scalar_lea.vmem %s13, %s1359
      $region84: #{_autoencoder_jit.1} parent=79 // pred_fallthru
        _
    $region80: #{_autoencoder_jit.1} parent=5 // pred_fallthru
      _
  $region6: #{_autoencoder_jit.1} parent=0 // loop_footer
    %s23 = sadd.s32 1, %s19
  $region7: #{_autoencoder_jit.1} parent=0 // loop_footer_branch
    %18 = sbr.rel target = $region3
  $region8: #{_autoencoder_jit.1} parent=0 // loop_exit
    _

</llo_original>
